<compile_context>
chip_gen: v6e
topology: v6e:2x2x1
jax: 0.10.0
libtpu: 0.0.40
codegen_flags: <defaults>
</compile_context>

<pallas_src>
import functools

import jax
import jax.numpy as jnp
from jax import lax
from jax.experimental import pallas as pl
from jax.experimental.pallas import tpu as pltpu


# ---------------------------------------------------------------------------
# Fused kernel: all conv layers + flatten + MLP head in one invocation
# ---------------------------------------------------------------------------
def _fused_cnn_kernel(*refs, B, dims, K, stride, pad, pooling_type,
                      n_layers, matmul_dtype):
    """refs = [x, conv_w[0..n), conv_b[0..n), fc1_w3d, fc1_b, fc2_w, fc2_b,
               out, act_buf[0..n]]

    dims[l] = (L_in, C_in, L_pad, L_out, L_pool, C_out) for layer l (static).
    act_buf[l] (l < n_layers): padded input of conv layer l, (B, L_pad, C_in).
    act_buf[n_layers]        : FC feature buffer, (B, L_f, C_last), no halo.
    """
    x_ref = refs[0]
    w_refs = refs[1:1 + n_layers]
    b_refs = refs[1 + n_layers:1 + 2 * n_layers]
    (fc1_w_ref, fc1_b_ref, fc2_w_ref, fc2_b_ref, o_ref) = \
        refs[1 + 2 * n_layers:6 + 2 * n_layers]
    act_refs = refs[6 + 2 * n_layers:]          # n_layers + 1 buffers

    f32 = jnp.float32

    def mxu(a, w):
        # Optional bf16 cast for the MXU (v6e/v7x); accumulate in f32.
        return jnp.dot(a.astype(matmul_dtype), w.astype(matmul_dtype),
                       preferred_element_type=f32)

    # ---- one-time halo zeroing (only the `pad` rows; interiors are always
    #      fully overwritten, so no full-buffer zero passes) ----
    if pad > 0:
        for l in range(n_layers):
            L_in, C_in = dims[l][0], dims[l][1]
            halo = jnp.zeros((B, pad, C_in), f32)
            act_refs[l][:, 0:pad, :] = halo
            act_refs[l][:, pad + L_in:pad + L_in + pad, :] = halo

    # Seed layer-0 interior with the input (single full-slab store).
    L0 = dims[0][0]
    act_refs[0][:, pad:pad + L0, :] = x_ref[...].astype(f32)

    # ---- conv / ReLU / pool stack ----
    for l in range(n_layers):                   # static Python loop over layers
        L_in, C_in, L_pad, L_out, L_pool, C_out = dims[l]
        src = act_refs[l]
        dst = act_refs[l + 1]
        off = pad if (l + 1 < n_layers) else 0  # FC buffer has no halo

        # Tap weights loaded once per layer: K values of shape (C_in, C_out).
        w_taps = [w_refs[l][k] for k in range(K)]
        bias = b_refs[l][...]                   # (1, C_out)

        # Shifted-window reads for each tap, split into even / odd conv output
        # positions so the pool(kernel=2, stride=2, floor) folds into the
        # accumulation (pure VPU max/avg on live vregs afterwards).
        wins_e = [src[:, pl.ds(k, L_pool, 2 * stride), :] for k in range(K)]
        wins_o = [src[:, pl.ds(k + stride, L_pool, 2 * stride), :]
                  for k in range(K)]

        # TODO(synk): replace with an M-tiled fori_loop once B grows (vreg
        # live-range / spill concern); at B=2 static unroll is fine.
        for b in range(B):
            acc_e = jnp.zeros((L_pool, C_out), f32)
            acc_o = jnp.zeros((L_pool, C_out), f32)
            for k in range(K):
                acc_e = acc_e + mxu(wins_e[k][b], w_taps[k])
                acc_o = acc_o + mxu(wins_o[k][b], w_taps[k])
            y_e = jnp.maximum(acc_e + bias, 0.0)
            y_o = jnp.maximum(acc_o + bias, 0.0)
            if pooling_type == 'max':
                pooled = jnp.maximum(y_e, y_o)      # (L_pool, C_out)
            else:  # 'avg'
                pooled = (y_e + y_o) * 0.5
            # The only store of this layer: aligned interior write.
            dst[b, off:off + L_pool, :] = pooled

    # ---- head: flatten folded into the fc1 contraction ----
    L_f, C_f = dims[-1][4], dims[-1][5]
    feat = act_refs[n_layers][...]              # (B, L_f, C_f) value
    acc = jnp.zeros((B, 128), f32)
    for l in range(L_f):
        acc = acc + mxu(feat[:, l, :], fc1_w_ref[l])   # (B,C_f) x (C_f,128)
    h = jnp.maximum(acc + fc1_b_ref[...], 0.0)
    # TODO(synk): dropout is identity (inference semantics).
    o_ref[...] = (mxu(h, fc2_w_ref[...]) + fc2_b_ref[...]).astype(o_ref.dtype)


# ---------------------------------------------------------------------------
# Shape bookkeeping + Pallas wrapper
# ---------------------------------------------------------------------------
def _layer_dims(cfg, input_length):
    K, s, p = cfg['kernel_size'], cfg['stride'], cfg['padding']
    hid = cfg['hidden_channels']
    dims = []
    L, C_in = input_length, cfg['input_channels']
    for _ in range(cfg['n_layers']):
        L_pad = L + 2 * p
        L_out = (L_pad - K) // s + 1
        L_pool = L_out // 2
        dims.append((L, C_in, L_pad, L_out, L_pool, hid))
        L, C_in = L_pool, hid
    return dims


def _padded_bytes(shape, dtype):
    """Approx VMEM footprint of an array, padded to (8,128) tiles."""
    s = list(shape)
    if len(s) == 1:
        s = [1] + s
    lead = 1
    for d in s[:-2]:
        lead *= d
    sub = -(-s[-2] // 8) * 8
    lane = -(-s[-1] // 128) * 128
    return lead * sub * lane * jnp.dtype(dtype).itemsize


def forward_pallas(params, x_ncl, cfg, matmul_dtype=jnp.float32):
    """Single fused Pallas kernel for the whole forward pass."""
    B, _, L0 = x_ncl.shape
    K, stride, pad = cfg['kernel_size'], cfg['stride'], cfg['padding']
    n_layers = cfg['n_layers']
    assert n_layers >= 1, "Generic1DCNN kernel requires n_layers >= 1"
    num_classes = cfg['num_classes']
    dims = _layer_dims(cfg, L0)

    x_nlc = jnp.transpose(x_ncl, (0, 2, 1)).astype(jnp.float32)  # NCL -> NLC

    conv_ws = [w for (w, _) in params['convs']]   # each (K, C_in, C_out)
    conv_bs = [b for (_, b) in params['convs']]   # each (1, C_out)

    kernel = functools.partial(
        _fused_cnn_kernel, B=B, dims=tuple(dims), K=K, stride=stride, pad=pad,
        pooling_type=cfg['pooling_type'], n_layers=n_layers,
        matmul_dtype=matmul_dtype)

    def full_spec(shape):
        nd = len(shape)
        return pl.BlockSpec(shape, lambda *_: (0,) * nd)

    inputs = ([x_nlc] + conv_ws + conv_bs +
              [params['fc1_w_3d'], params['fc1_b'],
               params['fc2_w'], params['fc2_b']])
    in_specs = [full_spec(a.shape) for a in inputs]

    # Activation scratch: one padded buffer per conv layer + one FC feature
    # buffer.  (No im2col slabs, no conv-output buffers.)
    scratch = [pltpu.VMEM((B, d[2], d[1]), jnp.float32) for d in dims]
    scratch.append(pltpu.VMEM((B, dims[-1][4], dims[-1][5]), jnp.float32))

    # VMEM budget from the computed footprint (inputs are double-buffered by
    # default) with generous headroom -- keeps us honest on v7x's 64 MiB.
    vmem_bytes = sum(_padded_bytes(a.shape, a.dtype) for a in inputs) * 2
    vmem_bytes += sum(_padded_bytes((B, d[2], d[1]), jnp.float32) for d in dims)
    vmem_bytes += _padded_bytes((B, dims[-1][4], dims[-1][5]), jnp.float32)
    vmem_bytes += _padded_bytes((B, num_classes), jnp.float32) * 2
    vmem_limit = int(max(8 * 1024 * 1024, 2 * vmem_bytes))

    return pl.pallas_call(
        kernel,
        out_shape=jax.ShapeDtypeStruct((B, num_classes), jnp.float32),
        grid=(1,),
        in_specs=in_specs,
        out_specs=full_spec((B, num_classes)),
        scratch_shapes=scratch,
        compiler_params=pltpu.CompilerParams(
            dimension_semantics=("arbitrary",),
            vmem_limit_bytes=vmem_limit),
    )(*inputs)


# ---------------------------------------------------------------------------
# Parameter init (deterministic, PyTorch-like uniform(-1/sqrt(fan_in), ...))
# ---------------------------------------------------------------------------
def init_params(key, cfg, input_length):
    K = cfg['kernel_size']
    dims = _layer_dims(cfg, input_length)

    convs = []
    for (L_in, C_in, L_pad, L_out, L_pool, C_out) in dims:
        key, kw, kb = jax.random.split(key, 3)
        bound = 1.0 / (C_in * K) ** 0.5
        # kernel layout: (K, C_in, C_out)   (PyTorch stores (C_out, C_in, K))
        w = jax.random.uniform(kw, (K, C_in, C_out), jnp.float32, -bound, bound)
        b = jax.random.uniform(kb, (1, C_out), jnp.float32, -bound, bound)
        convs.append((w, b))

    L_f, C_f = dims[-1][4], dims[-1][5]
    F = C_f * L_f  # flattened feature size (PyTorch lazily sizes fc1 to this)
    key, k1w, k1b, k2w, k2b = jax.random.split(key, 5)
    b1 = 1.0 / F ** 0.5
    b2 = 1.0 / 128.0 ** 0.5
    fc1_w = jax.random.uniform(k1w, (F, 128), jnp.float32, -b1, b1)
    # (L_f, C_f, 128): row (l, c) == PyTorch channel-major flatten index
    # c*L_f + l, so the kernel contracts the NLC feature buffer directly
    # (no flatten / activation relayout in the kernel).
    fc1_w_3d = fc1_w.reshape(C_f, L_f, 128).transpose(1, 0, 2)
    params = {
        'convs': convs,
        'fc1_w': fc1_w,
        'fc1_w_3d': fc1_w_3d,
        'fc1_b': jax.random.uniform(k1b, (1, 128), jnp.float32, -b1, b1),
        'fc2_w': jax.random.uniform(k2w, (128, cfg['num_classes']),
                                    jnp.float32, -b2, b2),
        'fc2_b': jax.random.uniform(k2b, (1, cfg['num_classes']),
                                    jnp.float32, -b2, b2),
    }
    return params


# ---------------------------------------------------------------------------
# Pure-JAX reference mirroring the PyTorch forward (for verification)
# ---------------------------------------------------------------------------
def forward_reference(params, x_ncl, cfg):
    pad, stride, pool = cfg['padding'], cfg['stride'], cfg['pooling_type']
    x = x_ncl
    for (w, b) in params['convs']:
        w_oik = jnp.transpose(w, (2, 1, 0))           # (C_out, C_in, K)
        x = lax.conv_general_dilated(
            x, w_oik, window_strides=(stride,), padding=[(pad, pad)],
            dimension_numbers=('NCH', 'OIH', 'NCH'))
        x = jnp.maximum(x + b[0][None, :, None], 0.0)
        B, C, L = x.shape
        Lp = L // 2
        xw = x[:, :, :2 * Lp].reshape(B, C, Lp, 2)
        x = xw.max(-1) if pool == 'max' else xw.mean(-1)
    x = x.reshape(x.shape[0], -1)                     # channel-major flatten
    h = jnp.maximum(x @ params['fc1_w'] + params['fc1_b'][0], 0.0)
    return h @ params['fc2_w'] + params['fc2_b'][0]


# ---------------------------------------------------------------------------
if __name__ == "__main__":
    cfg = dict(input_channels=4, num_classes=10, n_layers=2, kernel_size=3,
               stride=1, padding=1, hidden_channels=8, dropout_prob=0.5,
               pooling_type='max', use_batch_norm=False)

    B, L = 2, 16
    key = jax.random.PRNGKey(0)
    key, kx = jax.random.split(key)
    x = jax.random.normal(kx, (B, cfg['input_channels'], L), jnp.float32)  # NCL

    params = init_params(key, cfg, L)

    out = forward_pallas(params, x, cfg)
    out = jax.block_until_ready(out)

    ref = forward_reference(params, x, cfg)
    assert out.shape == (B, cfg['num_classes'])
    assert jnp.allclose(out, ref, atol=1e-3, rtol=1e-3), "mismatch vs reference"

    print("KERNEL_OK")
</pallas_src>

<mosaic_0001>
module attributes {stable_mosaic.version = 11 : i64} {
  func.func @_fused_cnn_kernel(%arg0: i32, %arg1: memref<2x16x4xf32, #tpu.memory_space<vmem>>, %arg2: memref<3x4x8xf32, #tpu.memory_space<vmem>>, %arg3: memref<3x8x8xf32, #tpu.memory_space<vmem>>, %arg4: memref<1x8xf32, #tpu.memory_space<vmem>>, %arg5: memref<1x8xf32, #tpu.memory_space<vmem>>, %arg6: memref<4x8x128xf32, #tpu.memory_space<vmem>>, %arg7: memref<1x128xf32, #tpu.memory_space<vmem>>, %arg8: memref<128x10xf32, #tpu.memory_space<vmem>>, %arg9: memref<1x10xf32, #tpu.memory_space<vmem>>, %arg10: memref<2x10xf32, #tpu.memory_space<vmem>>, %arg11: memref<2x18x4xf32, #tpu.memory_space<vmem>>, %arg12: memref<2x10x8xf32, #tpu.memory_space<vmem>>, %arg13: memref<2x4x8xf32, #tpu.memory_space<vmem>>) attributes {dimension_semantics = [#tpu.dimension_semantics<arbitrary>], iteration_bounds = array<i64: 1>, scalar_prefetch = 0 : i64, scratch_operands = 3 : i64, tpu.core_type = #tpu.core_type<tc>, window_params = [{pipeline_mode = #tpu.pipeline_mode<synchronous>, transform_indices = @transform_0, window_bounds = array<i64: 2, 16, 4>}, {pipeline_mode = #tpu.pipeline_mode<synchronous>, transform_indices = @transform_1, window_bounds = array<i64: 3, 4, 8>}, {pipeline_mode = #tpu.pipeline_mode<synchronous>, transform_indices = @transform_2, window_bounds = array<i64: 3, 8, 8>}, {pipeline_mode = #tpu.pipeline_mode<synchronous>, transform_indices = @transform_3, window_bounds = array<i64: 1, 8>}, {pipeline_mode = #tpu.pipeline_mode<synchronous>, transform_indices = @transform_4, window_bounds = array<i64: 1, 8>}, {pipeline_mode = #tpu.pipeline_mode<synchronous>, transform_indices = @transform_5, window_bounds = array<i64: 4, 8, 128>}, {pipeline_mode = #tpu.pipeline_mode<synchronous>, transform_indices = @transform_6, window_bounds = array<i64: 1, 128>}, {pipeline_mode = #tpu.pipeline_mode<synchronous>, transform_indices = @transform_7, window_bounds = array<i64: 128, 10>}, {pipeline_mode = #tpu.pipeline_mode<synchronous>, transform_indices = @transform_8, window_bounds = array<i64: 1, 10>}, {pipeline_mode = #tpu.pipeline_mode<synchronous>, transform_indices = @transform_9, window_bounds = array<i64: 2, 10>}]} {
    %cst = arith.constant 0.000000e+00 : f32
    %0 = vector.broadcast %cst : f32 to vector<2x1x4xf32>
    %c0 = arith.constant 0 : index
    %c0_0 = arith.constant 0 : index
    %c0_1 = arith.constant 0 : index
    %1 = vector.load %arg11[%c0, %c0_0, %c0_1] : memref<2x18x4xf32, #tpu.memory_space<vmem>>, vector<2x1x4xf32>
    tpu.vector_store %arg11[%c0, %c0_0, %c0_1], %0 {strides = array<i32>} : memref<2x18x4xf32, #tpu.memory_space<vmem>>, vector<2x1x4xf32>,
    %c0_2 = arith.constant 0 : index
    %c17 = arith.constant 17 : index
    %c0_3 = arith.constant 0 : index
    %2 = vector.load %arg11[%c0_2, %c17, %c0_3] : memref<2x18x4xf32, #tpu.memory_space<vmem>>, vector<2x1x4xf32>
    tpu.vector_store %arg11[%c0_2, %c17, %c0_3], %0 {strides = array<i32>} : memref<2x18x4xf32, #tpu.memory_space<vmem>>, vector<2x1x4xf32>,
    %cst_4 = arith.constant 0.000000e+00 : f32
    %3 = vector.broadcast %cst_4 : f32 to vector<2x1x8xf32>
    %c0_5 = arith.constant 0 : index
    %c0_6 = arith.constant 0 : index
    %c0_7 = arith.constant 0 : index
    %4 = vector.load %arg12[%c0_5, %c0_6, %c0_7] : memref<2x10x8xf32, #tpu.memory_space<vmem>>, vector<2x1x8xf32>
    tpu.vector_store %arg12[%c0_5, %c0_6, %c0_7], %3 {strides = array<i32>} : memref<2x10x8xf32, #tpu.memory_space<vmem>>, vector<2x1x8xf32>,
    %c0_8 = arith.constant 0 : index
    %c9 = arith.constant 9 : index
    %c0_9 = arith.constant 0 : index
    %5 = vector.load %arg12[%c0_8, %c9, %c0_9] : memref<2x10x8xf32, #tpu.memory_space<vmem>>, vector<2x1x8xf32>
    tpu.vector_store %arg12[%c0_8, %c9, %c0_9], %3 {strides = array<i32>} : memref<2x10x8xf32, #tpu.memory_space<vmem>>, vector<2x1x8xf32>,
    %c0_10 = arith.constant 0 : index
    %c0_11 = arith.constant 0 : index
    %c0_12 = arith.constant 0 : index
    %6 = vector.load %arg1[%c0_10, %c0_11, %c0_12] : memref<2x16x4xf32, #tpu.memory_space<vmem>>, vector<2x16x4xf32>
    %c0_13 = arith.constant 0 : index
    %c1 = arith.constant 1 : index
    %c0_14 = arith.constant 0 : index
    %7 = vector.load %arg11[%c0_13, %c1, %c0_14] : memref<2x18x4xf32, #tpu.memory_space<vmem>>, vector<2x16x4xf32>
    tpu.vector_store %arg11[%c0_13, %c1, %c0_14], %6 {strides = array<i32>} : memref<2x18x4xf32, #tpu.memory_space<vmem>>, vector<2x16x4xf32>,
    %c0_15 = arith.constant 0 : index
    %c0_16 = arith.constant 0 : index
    %c0_17 = arith.constant 0 : index
    %8 = vector.load %arg2[%c0_15, %c0_16, %c0_17] : memref<3x4x8xf32, #tpu.memory_space<vmem>>, vector<1x4x8xf32>
    %9 = vector.shape_cast %8 : vector<1x4x8xf32> to vector<4x8xf32>
    %c1_18 = arith.constant 1 : index
    %c0_19 = arith.constant 0 : index
    %c0_20 = arith.constant 0 : index
    %10 = vector.load %arg2[%c1_18, %c0_19, %c0_20] : memref<3x4x8xf32, #tpu.memory_space<vmem>>, vector<1x4x8xf32>
    %11 = vector.shape_cast %10 : vector<1x4x8xf32> to vector<4x8xf32>
    %c2 = arith.constant 2 : index
    %c0_21 = arith.constant 0 : index
    %c0_22 = arith.constant 0 : index
    %12 = vector.load %arg2[%c2, %c0_21, %c0_22] : memref<3x4x8xf32, #tpu.memory_space<vmem>>, vector<1x4x8xf32>
    %13 = vector.shape_cast %12 : vector<1x4x8xf32> to vector<4x8xf32>
    %c0_23 = arith.constant 0 : index
    %c0_24 = arith.constant 0 : index
    %14 = vector.load %arg4[%c0_23, %c0_24] : memref<1x8xf32, #tpu.memory_space<vmem>>, vector<1x8xf32>
    %c0_25 = arith.constant 0 : index
    %c0_26 = arith.constant 0 : index
    %c0_27 = arith.constant 0 : index
    %15 = tpu.strided_load %arg11[%c0_25, %c0_26, %c0_27] {strides = array<i32: 1, 2, 1>} : memref<2x18x4xf32, #tpu.memory_space<vmem>>, vector<2x8x4xf32>
    %c0_28 = arith.constant 0 : index
    %c1_29 = arith.constant 1 : index
    %c0_30 = arith.constant 0 : index
    %16 = tpu.strided_load %arg11[%c0_28, %c1_29, %c0_30] {strides = array<i32: 1, 2, 1>} : memref<2x18x4xf32, #tpu.memory_space<vmem>>, vector<2x8x4xf32>
    %c0_31 = arith.constant 0 : index
    %c2_32 = arith.constant 2 : index
    %c0_33 = arith.constant 0 : index
    %17 = tpu.strided_load %arg11[%c0_31, %c2_32, %c0_33] {strides = array<i32: 1, 2, 1>} : memref<2x18x4xf32, #tpu.memory_space<vmem>>, vector<2x8x4xf32>
    %c0_34 = arith.constant 0 : index
    %c1_35 = arith.constant 1 : index
    %c0_36 = arith.constant 0 : index
    %18 = tpu.strided_load %arg11[%c0_34, %c1_35, %c0_36] {strides = array<i32: 1, 2, 1>} : memref<2x18x4xf32, #tpu.memory_space<vmem>>, vector<2x8x4xf32>
    %c0_37 = arith.constant 0 : index
    %c2_38 = arith.constant 2 : index
    %c0_39 = arith.constant 0 : index
    %19 = tpu.strided_load %arg11[%c0_37, %c2_38, %c0_39] {strides = array<i32: 1, 2, 1>} : memref<2x18x4xf32, #tpu.memory_space<vmem>>, vector<2x8x4xf32>
    %c0_40 = arith.constant 0 : index
    %c3 = arith.constant 3 : index
    %c0_41 = arith.constant 0 : index
    %20 = tpu.strided_load %arg11[%c0_40, %c3, %c0_41] {strides = array<i32: 1, 2, 1>} : memref<2x18x4xf32, #tpu.memory_space<vmem>>, vector<2x8x4xf32>
    %cst_42 = arith.constant 0.000000e+00 : f32
    %21 = vector.broadcast %cst_42 : f32 to vector<8x8xf32>
    %cst_43 = arith.constant 0.000000e+00 : f32
    %22 = vector.broadcast %cst_43 : f32 to vector<8x8xf32>
    %23 = vector.extract_strided_slice %15 {offsets = [0, 0, 0], sizes = [1, 8, 4], strides = [1, 1, 1]} : vector<2x8x4xf32> to vector<1x8x4xf32>
    %24 = vector.shape_cast %23 : vector<1x8x4xf32> to vector<8x4xf32>
    %cst_44 = arith.constant dense<0.000000e+00> : vector<8x8xf32>
    %25 = tpu.matmul %24, %9, %cst_44 {dimension_numbers = #tpu.dot_dimension_numbers<[1], [0], [0], [1], [0, 0, 1, 1], [], []>} : vector<8x4xf32>, vector<4x8xf32>, vector<8x8xf32> -> vector<8x8xf32>
    %26 = arith.addf %21, %25 : vector<8x8xf32>
    %27 = vector.extract_strided_slice %18 {offsets = [0, 0, 0], sizes = [1, 8, 4], strides = [1, 1, 1]} : vector<2x8x4xf32> to vector<1x8x4xf32>
    %28 = vector.shape_cast %27 : vector<1x8x4xf32> to vector<8x4xf32>
    %cst_45 = arith.constant dense<0.000000e+00> : vector<8x8xf32>
    %29 = tpu.matmul %28, %9, %cst_45 {dimension_numbers = #tpu.dot_dimension_numbers<[1], [0], [0], [1], [0, 0, 1, 1], [], []>} : vector<8x4xf32>, vector<4x8xf32>, vector<8x8xf32> -> vector<8x8xf32>
    %30 = arith.addf %22, %29 : vector<8x8xf32>
    %31 = vector.extract_strided_slice %16 {offsets = [0, 0, 0], sizes = [1, 8, 4], strides = [1, 1, 1]} : vector<2x8x4xf32> to vector<1x8x4xf32>
    %32 = vector.shape_cast %31 : vector<1x8x4xf32> to vector<8x4xf32>
    %cst_46 = arith.constant dense<0.000000e+00> : vector<8x8xf32>
    %33 = tpu.matmul %32, %11, %cst_46 {dimension_numbers = #tpu.dot_dimension_numbers<[1], [0], [0], [1], [0, 0, 1, 1], [], []>} : vector<8x4xf32>, vector<4x8xf32>, vector<8x8xf32> -> vector<8x8xf32>
    %34 = arith.addf %26, %33 : vector<8x8xf32>
    %35 = vector.extract_strided_slice %19 {offsets = [0, 0, 0], sizes = [1, 8, 4], strides = [1, 1, 1]} : vector<2x8x4xf32> to vector<1x8x4xf32>
    %36 = vector.shape_cast %35 : vector<1x8x4xf32> to vector<8x4xf32>
    %cst_47 = arith.constant dense<0.000000e+00> : vector<8x8xf32>
    %37 = tpu.matmul %36, %11, %cst_47 {dimension_numbers = #tpu.dot_dimension_numbers<[1], [0], [0], [1], [0, 0, 1, 1], [], []>} : vector<8x4xf32>, vector<4x8xf32>, vector<8x8xf32> -> vector<8x8xf32>
    %38 = arith.addf %30, %37 : vector<8x8xf32>
    %39 = vector.extract_strided_slice %17 {offsets = [0, 0, 0], sizes = [1, 8, 4], strides = [1, 1, 1]} : vector<2x8x4xf32> to vector<1x8x4xf32>
    %40 = vector.shape_cast %39 : vector<1x8x4xf32> to vector<8x4xf32>
    %cst_48 = arith.constant dense<0.000000e+00> : vector<8x8xf32>
    %41 = tpu.matmul %40, %13, %cst_48 {dimension_numbers = #tpu.dot_dimension_numbers<[1], [0], [0], [1], [0, 0, 1, 1], [], []>} : vector<8x4xf32>, vector<4x8xf32>, vector<8x8xf32> -> vector<8x8xf32>
    %42 = arith.addf %34, %41 : vector<8x8xf32>
    %43 = vector.extract_strided_slice %20 {offsets = [0, 0, 0], sizes = [1, 8, 4], strides = [1, 1, 1]} : vector<2x8x4xf32> to vector<1x8x4xf32>
    %44 = vector.shape_cast %43 : vector<1x8x4xf32> to vector<8x4xf32>
    %cst_49 = arith.constant dense<0.000000e+00> : vector<8x8xf32>
    %45 = tpu.matmul %44, %13, %cst_49 {dimension_numbers = #tpu.dot_dimension_numbers<[1], [0], [0], [1], [0, 0, 1, 1], [], []>} : vector<8x4xf32>, vector<4x8xf32>, vector<8x8xf32> -> vector<8x8xf32>
    %46 = arith.addf %38, %45 : vector<8x8xf32>
    %47 = vector.broadcast %14 : vector<1x8xf32> to vector<8x8xf32>
    %48 = arith.addf %42, %47 : vector<8x8xf32>
    %cst_50 = arith.constant 0.000000e+00 : f32
    %49 = vector.broadcast %cst_50 : f32 to vector<8x8xf32>
    %50 = arith.maximumf %48, %49 : vector<8x8xf32>
    %51 = vector.broadcast %14 : vector<1x8xf32> to vector<8x8xf32>
    %52 = arith.addf %46, %51 : vector<8x8xf32>
    %cst_51 = arith.constant 0.000000e+00 : f32
    %53 = vector.broadcast %cst_51 : f32 to vector<8x8xf32>
    %54 = arith.maximumf %52, %53 : vector<8x8xf32>
    %55 = arith.maximumf %50, %54 : vector<8x8xf32>
    %c0_52 = arith.constant 0 : index
    %c1_53 = arith.constant 1 : index
    %c0_54 = arith.constant 0 : index
    %56 = vector.load %arg12[%c0_52, %c1_53, %c0_54] : memref<2x10x8xf32, #tpu.memory_space<vmem>>, vector<1x8x8xf32>
    %57 = vector.shape_cast %56 : vector<1x8x8xf32> to vector<8x8xf32>
    %58 = vector.shape_cast %55 : vector<8x8xf32> to vector<1x8x8xf32>
    tpu.vector_store %arg12[%c0_52, %c1_53, %c0_54], %58 {strides = array<i32>} : memref<2x10x8xf32, #tpu.memory_space<vmem>>, vector<1x8x8xf32>,
    %cst_55 = arith.constant 0.000000e+00 : f32
    %59 = vector.broadcast %cst_55 : f32 to vector<8x8xf32>
    %cst_56 = arith.constant 0.000000e+00 : f32
    %60 = vector.broadcast %cst_56 : f32 to vector<8x8xf32>
    %61 = vector.extract_strided_slice %15 {offsets = [1, 0, 0], sizes = [1, 8, 4], strides = [1, 1, 1]} : vector<2x8x4xf32> to vector<1x8x4xf32>
    %62 = vector.shape_cast %61 : vector<1x8x4xf32> to vector<8x4xf32>
    %cst_57 = arith.constant dense<0.000000e+00> : vector<8x8xf32>
    %63 = tpu.matmul %62, %9, %cst_57 {dimension_numbers = #tpu.dot_dimension_numbers<[1], [0], [0], [1], [0, 0, 1, 1], [], []>} : vector<8x4xf32>, vector<4x8xf32>, vector<8x8xf32> -> vector<8x8xf32>
    %64 = arith.addf %59, %63 : vector<8x8xf32>
    %65 = vector.extract_strided_slice %18 {offsets = [1, 0, 0], sizes = [1, 8, 4], strides = [1, 1, 1]} : vector<2x8x4xf32> to vector<1x8x4xf32>
    %66 = vector.shape_cast %65 : vector<1x8x4xf32> to vector<8x4xf32>
    %cst_58 = arith.constant dense<0.000000e+00> : vector<8x8xf32>
    %67 = tpu.matmul %66, %9, %cst_58 {dimension_numbers = #tpu.dot_dimension_numbers<[1], [0], [0], [1], [0, 0, 1, 1], [], []>} : vector<8x4xf32>, vector<4x8xf32>, vector<8x8xf32> -> vector<8x8xf32>
    %68 = arith.addf %60, %67 : vector<8x8xf32>
    %69 = vector.extract_strided_slice %16 {offsets = [1, 0, 0], sizes = [1, 8, 4], strides = [1, 1, 1]} : vector<2x8x4xf32> to vector<1x8x4xf32>
    %70 = vector.shape_cast %69 : vector<1x8x4xf32> to vector<8x4xf32>
    %cst_59 = arith.constant dense<0.000000e+00> : vector<8x8xf32>
    %71 = tpu.matmul %70, %11, %cst_59 {dimension_numbers = #tpu.dot_dimension_numbers<[1], [0], [0], [1], [0, 0, 1, 1], [], []>} : vector<8x4xf32>, vector<4x8xf32>, vector<8x8xf32> -> vector<8x8xf32>
    %72 = arith.addf %64, %71 : vector<8x8xf32>
    %73 = vector.extract_strided_slice %19 {offsets = [1, 0, 0], sizes = [1, 8, 4], strides = [1, 1, 1]} : vector<2x8x4xf32> to vector<1x8x4xf32>
    %74 = vector.shape_cast %73 : vector<1x8x4xf32> to vector<8x4xf32>
    %cst_60 = arith.constant dense<0.000000e+00> : vector<8x8xf32>
    %75 = tpu.matmul %74, %11, %cst_60 {dimension_numbers = #tpu.dot_dimension_numbers<[1], [0], [0], [1], [0, 0, 1, 1], [], []>} : vector<8x4xf32>, vector<4x8xf32>, vector<8x8xf32> -> vector<8x8xf32>
    %76 = arith.addf %68, %75 : vector<8x8xf32>
    %77 = vector.extract_strided_slice %17 {offsets = [1, 0, 0], sizes = [1, 8, 4], strides = [1, 1, 1]} : vector<2x8x4xf32> to vector<1x8x4xf32>
    %78 = vector.shape_cast %77 : vector<1x8x4xf32> to vector<8x4xf32>
    %cst_61 = arith.constant dense<0.000000e+00> : vector<8x8xf32>
    %79 = tpu.matmul %78, %13, %cst_61 {dimension_numbers = #tpu.dot_dimension_numbers<[1], [0], [0], [1], [0, 0, 1, 1], [], []>} : vector<8x4xf32>, vector<4x8xf32>, vector<8x8xf32> -> vector<8x8xf32>
    %80 = arith.addf %72, %79 : vector<8x8xf32>
    %81 = vector.extract_strided_slice %20 {offsets = [1, 0, 0], sizes = [1, 8, 4], strides = [1, 1, 1]} : vector<2x8x4xf32> to vector<1x8x4xf32>
    %82 = vector.shape_cast %81 : vector<1x8x4xf32> to vector<8x4xf32>
    %cst_62 = arith.constant dense<0.000000e+00> : vector<8x8xf32>
    %83 = tpu.matmul %82, %13, %cst_62 {dimension_numbers = #tpu.dot_dimension_numbers<[1], [0], [0], [1], [0, 0, 1, 1], [], []>} : vector<8x4xf32>, vector<4x8xf32>, vector<8x8xf32> -> vector<8x8xf32>
    %84 = arith.addf %76, %83 : vector<8x8xf32>
    %85 = vector.broadcast %14 : vector<1x8xf32> to vector<8x8xf32>
    %86 = arith.addf %80, %85 : vector<8x8xf32>
    %cst_63 = arith.constant 0.000000e+00 : f32
    %87 = vector.broadcast %cst_63 : f32 to vector<8x8xf32>
    %88 = arith.maximumf %86, %87 : vector<8x8xf32>
    %89 = vector.broadcast %14 : vector<1x8xf32> to vector<8x8xf32>
    %90 = arith.addf %84, %89 : vector<8x8xf32>
    %cst_64 = arith.constant 0.000000e+00 : f32
    %91 = vector.broadcast %cst_64 : f32 to vector<8x8xf32>
    %92 = arith.maximumf %90, %91 : vector<8x8xf32>
    %93 = arith.maximumf %88, %92 : vector<8x8xf32>
    %c1_65 = arith.constant 1 : index
    %c1_66 = arith.constant 1 : index
    %c0_67 = arith.constant 0 : index
    %94 = vector.load %arg12[%c1_65, %c1_66, %c0_67] : memref<2x10x8xf32, #tpu.memory_space<vmem>>, vector<1x8x8xf32>
    %95 = vector.shape_cast %94 : vector<1x8x8xf32> to vector<8x8xf32>
    %96 = vector.shape_cast %93 : vector<8x8xf32> to vector<1x8x8xf32>
    tpu.vector_store %arg12[%c1_65, %c1_66, %c0_67], %96 {strides = array<i32>} : memref<2x10x8xf32, #tpu.memory_space<vmem>>, vector<1x8x8xf32>,
    %c0_68 = arith.constant 0 : index
    %c0_69 = arith.constant 0 : index
    %c0_70 = arith.constant 0 : index
    %97 = vector.load %arg3[%c0_68, %c0_69, %c0_70] : memref<3x8x8xf32, #tpu.memory_space<vmem>>, vector<1x8x8xf32>
    %98 = vector.shape_cast %97 : vector<1x8x8xf32> to vector<8x8xf32>
    %c1_71 = arith.constant 1 : index
    %c0_72 = arith.constant 0 : index
    %c0_73 = arith.constant 0 : index
    %99 = vector.load %arg3[%c1_71, %c0_72, %c0_73] : memref<3x8x8xf32, #tpu.memory_space<vmem>>, vector<1x8x8xf32>
    %100 = vector.shape_cast %99 : vector<1x8x8xf32> to vector<8x8xf32>
    %c2_74 = arith.constant 2 : index
    %c0_75 = arith.constant 0 : index
    %c0_76 = arith.constant 0 : index
    %101 = vector.load %arg3[%c2_74, %c0_75, %c0_76] : memref<3x8x8xf32, #tpu.memory_space<vmem>>, vector<1x8x8xf32>
    %102 = vector.shape_cast %101 : vector<1x8x8xf32> to vector<8x8xf32>
    %c0_77 = arith.constant 0 : index
    %c0_78 = arith.constant 0 : index
    %103 = vector.load %arg5[%c0_77, %c0_78] : memref<1x8xf32, #tpu.memory_space<vmem>>, vector<1x8xf32>
    %c0_79 = arith.constant 0 : index
    %c0_80 = arith.constant 0 : index
    %c0_81 = arith.constant 0 : index
    %104 = tpu.strided_load %arg12[%c0_79, %c0_80, %c0_81] {strides = array<i32: 1, 2, 1>} : memref<2x10x8xf32, #tpu.memory_space<vmem>>, vector<2x4x8xf32>
    %c0_82 = arith.constant 0 : index
    %c1_83 = arith.constant 1 : index
    %c0_84 = arith.constant 0 : index
    %105 = tpu.strided_load %arg12[%c0_82, %c1_83, %c0_84] {strides = array<i32: 1, 2, 1>} : memref<2x10x8xf32, #tpu.memory_space<vmem>>, vector<2x4x8xf32>
    %c0_85 = arith.constant 0 : index
    %c2_86 = arith.constant 2 : index
    %c0_87 = arith.constant 0 : index
    %106 = tpu.strided_load %arg12[%c0_85, %c2_86, %c0_87] {strides = array<i32: 1, 2, 1>} : memref<2x10x8xf32, #tpu.memory_space<vmem>>, vector<2x4x8xf32>
    %c0_88 = arith.constant 0 : index
    %c1_89 = arith.constant 1 : index
    %c0_90 = arith.constant 0 : index
    %107 = tpu.strided_load %arg12[%c0_88, %c1_89, %c0_90] {strides = array<i32: 1, 2, 1>} : memref<2x10x8xf32, #tpu.memory_space<vmem>>, vector<2x4x8xf32>
    %c0_91 = arith.constant 0 : index
    %c2_92 = arith.constant 2 : index
    %c0_93 = arith.constant 0 : index
    %108 = tpu.strided_load %arg12[%c0_91, %c2_92, %c0_93] {strides = array<i32: 1, 2, 1>} : memref<2x10x8xf32, #tpu.memory_space<vmem>>, vector<2x4x8xf32>
    %c0_94 = arith.constant 0 : index
    %c3_95 = arith.constant 3 : index
    %c0_96 = arith.constant 0 : index
    %109 = tpu.strided_load %arg12[%c0_94, %c3_95, %c0_96] {strides = array<i32: 1, 2, 1>} : memref<2x10x8xf32, #tpu.memory_space<vmem>>, vector<2x4x8xf32>
    %cst_97 = arith.constant 0.000000e+00 : f32
    %110 = vector.broadcast %cst_97 : f32 to vector<4x8xf32>
    %cst_98 = arith.constant 0.000000e+00 : f32
    %111 = vector.broadcast %cst_98 : f32 to vector<4x8xf32>
    %112 = vector.extract_strided_slice %104 {offsets = [0, 0, 0], sizes = [1, 4, 8], strides = [1, 1, 1]} : vector<2x4x8xf32> to vector<1x4x8xf32>
    %113 = vector.shape_cast %112 : vector<1x4x8xf32> to vector<4x8xf32>
    %cst_99 = arith.constant dense<0.000000e+00> : vector<4x8xf32>
    %114 = tpu.matmul %113, %98, %cst_99 {dimension_numbers = #tpu.dot_dimension_numbers<[1], [0], [0], [1], [0, 0, 1, 1], [], []>} : vector<4x8xf32>, vector<8x8xf32>, vector<4x8xf32> -> vector<4x8xf32>
    %115 = arith.addf %110, %114 : vector<4x8xf32>
    %116 = vector.extract_strided_slice %107 {offsets = [0, 0, 0], sizes = [1, 4, 8], strides = [1, 1, 1]} : vector<2x4x8xf32> to vector<1x4x8xf32>
    %117 = vector.shape_cast %116 : vector<1x4x8xf32> to vector<4x8xf32>
    %cst_100 = arith.constant dense<0.000000e+00> : vector<4x8xf32>
    %118 = tpu.matmul %117, %98, %cst_100 {dimension_numbers = #tpu.dot_dimension_numbers<[1], [0], [0], [1], [0, 0, 1, 1], [], []>} : vector<4x8xf32>, vector<8x8xf32>, vector<4x8xf32> -> vector<4x8xf32>
    %119 = arith.addf %111, %118 : vector<4x8xf32>
    %120 = vector.extract_strided_slice %105 {offsets = [0, 0, 0], sizes = [1, 4, 8], strides = [1, 1, 1]} : vector<2x4x8xf32> to vector<1x4x8xf32>
    %121 = vector.shape_cast %120 : vector<1x4x8xf32> to vector<4x8xf32>
    %cst_101 = arith.constant dense<0.000000e+00> : vector<4x8xf32>
    %122 = tpu.matmul %121, %100, %cst_101 {dimension_numbers = #tpu.dot_dimension_numbers<[1], [0], [0], [1], [0, 0, 1, 1], [], []>} : vector<4x8xf32>, vector<8x8xf32>, vector<4x8xf32> -> vector<4x8xf32>
    %123 = arith.addf %115, %122 : vector<4x8xf32>
    %124 = vector.extract_strided_slice %108 {offsets = [0, 0, 0], sizes = [1, 4, 8], strides = [1, 1, 1]} : vector<2x4x8xf32> to vector<1x4x8xf32>
    %125 = vector.shape_cast %124 : vector<1x4x8xf32> to vector<4x8xf32>
    %cst_102 = arith.constant dense<0.000000e+00> : vector<4x8xf32>
    %126 = tpu.matmul %125, %100, %cst_102 {dimension_numbers = #tpu.dot_dimension_numbers<[1], [0], [0], [1], [0, 0, 1, 1], [], []>} : vector<4x8xf32>, vector<8x8xf32>, vector<4x8xf32> -> vector<4x8xf32>
    %127 = arith.addf %119, %126 : vector<4x8xf32>
    %128 = vector.extract_strided_slice %106 {offsets = [0, 0, 0], sizes = [1, 4, 8], strides = [1, 1, 1]} : vector<2x4x8xf32> to vector<1x4x8xf32>
    %129 = vector.shape_cast %128 : vector<1x4x8xf32> to vector<4x8xf32>
    %cst_103 = arith.constant dense<0.000000e+00> : vector<4x8xf32>
    %130 = tpu.matmul %129, %102, %cst_103 {dimension_numbers = #tpu.dot_dimension_numbers<[1], [0], [0], [1], [0, 0, 1, 1], [], []>} : vector<4x8xf32>, vector<8x8xf32>, vector<4x8xf32> -> vector<4x8xf32>
    %131 = arith.addf %123, %130 : vector<4x8xf32>
    %132 = vector.extract_strided_slice %109 {offsets = [0, 0, 0], sizes = [1, 4, 8], strides = [1, 1, 1]} : vector<2x4x8xf32> to vector<1x4x8xf32>
    %133 = vector.shape_cast %132 : vector<1x4x8xf32> to vector<4x8xf32>
    %cst_104 = arith.constant dense<0.000000e+00> : vector<4x8xf32>
    %134 = tpu.matmul %133, %102, %cst_104 {dimension_numbers = #tpu.dot_dimension_numbers<[1], [0], [0], [1], [0, 0, 1, 1], [], []>} : vector<4x8xf32>, vector<8x8xf32>, vector<4x8xf32> -> vector<4x8xf32>
    %135 = arith.addf %127, %134 : vector<4x8xf32>
    %136 = vector.broadcast %103 : vector<1x8xf32> to vector<4x8xf32>
    %137 = arith.addf %131, %136 : vector<4x8xf32>
    %cst_105 = arith.constant 0.000000e+00 : f32
    %138 = vector.broadcast %cst_105 : f32 to vector<4x8xf32>
    %139 = arith.maximumf %137, %138 : vector<4x8xf32>
    %140 = vector.broadcast %103 : vector<1x8xf32> to vector<4x8xf32>
    %141 = arith.addf %135, %140 : vector<4x8xf32>
    %cst_106 = arith.constant 0.000000e+00 : f32
    %142 = vector.broadcast %cst_106 : f32 to vector<4x8xf32>
    %143 = arith.maximumf %141, %142 : vector<4x8xf32>
    %144 = arith.maximumf %139, %143 : vector<4x8xf32>
    %c0_107 = arith.constant 0 : index
    %c0_108 = arith.constant 0 : index
    %c0_109 = arith.constant 0 : index
    %145 = vector.load %arg13[%c0_107, %c0_108, %c0_109] : memref<2x4x8xf32, #tpu.memory_space<vmem>>, vector<1x4x8xf32>
    %146 = vector.shape_cast %145 : vector<1x4x8xf32> to vector<4x8xf32>
    %147 = vector.shape_cast %144 : vector<4x8xf32> to vector<1x4x8xf32>
    tpu.vector_store %arg13[%c0_107, %c0_108, %c0_109], %147 {strides = array<i32>} : memref<2x4x8xf32, #tpu.memory_space<vmem>>, vector<1x4x8xf32>,
    %cst_110 = arith.constant 0.000000e+00 : f32
    %148 = vector.broadcast %cst_110 : f32 to vector<4x8xf32>
    %cst_111 = arith.constant 0.000000e+00 : f32
    %149 = vector.broadcast %cst_111 : f32 to vector<4x8xf32>
    %150 = vector.extract_strided_slice %104 {offsets = [1, 0, 0], sizes = [1, 4, 8], strides = [1, 1, 1]} : vector<2x4x8xf32> to vector<1x4x8xf32>
    %151 = vector.shape_cast %150 : vector<1x4x8xf32> to vector<4x8xf32>
    %cst_112 = arith.constant dense<0.000000e+00> : vector<4x8xf32>
    %152 = tpu.matmul %151, %98, %cst_112 {dimension_numbers = #tpu.dot_dimension_numbers<[1], [0], [0], [1], [0, 0, 1, 1], [], []>} : vector<4x8xf32>, vector<8x8xf32>, vector<4x8xf32> -> vector<4x8xf32>
    %153 = arith.addf %148, %152 : vector<4x8xf32>
    %154 = vector.extract_strided_slice %107 {offsets = [1, 0, 0], sizes = [1, 4, 8], strides = [1, 1, 1]} : vector<2x4x8xf32> to vector<1x4x8xf32>
    %155 = vector.shape_cast %154 : vector<1x4x8xf32> to vector<4x8xf32>
    %cst_113 = arith.constant dense<0.000000e+00> : vector<4x8xf32>
    %156 = tpu.matmul %155, %98, %cst_113 {dimension_numbers = #tpu.dot_dimension_numbers<[1], [0], [0], [1], [0, 0, 1, 1], [], []>} : vector<4x8xf32>, vector<8x8xf32>, vector<4x8xf32> -> vector<4x8xf32>
    %157 = arith.addf %149, %156 : vector<4x8xf32>
    %158 = vector.extract_strided_slice %105 {offsets = [1, 0, 0], sizes = [1, 4, 8], strides = [1, 1, 1]} : vector<2x4x8xf32> to vector<1x4x8xf32>
    %159 = vector.shape_cast %158 : vector<1x4x8xf32> to vector<4x8xf32>
    %cst_114 = arith.constant dense<0.000000e+00> : vector<4x8xf32>
    %160 = tpu.matmul %159, %100, %cst_114 {dimension_numbers = #tpu.dot_dimension_numbers<[1], [0], [0], [1], [0, 0, 1, 1], [], []>} : vector<4x8xf32>, vector<8x8xf32>, vector<4x8xf32> -> vector<4x8xf32>
    %161 = arith.addf %153, %160 : vector<4x8xf32>
    %162 = vector.extract_strided_slice %108 {offsets = [1, 0, 0], sizes = [1, 4, 8], strides = [1, 1, 1]} : vector<2x4x8xf32> to vector<1x4x8xf32>
    %163 = vector.shape_cast %162 : vector<1x4x8xf32> to vector<4x8xf32>
    %cst_115 = arith.constant dense<0.000000e+00> : vector<4x8xf32>
    %164 = tpu.matmul %163, %100, %cst_115 {dimension_numbers = #tpu.dot_dimension_numbers<[1], [0], [0], [1], [0, 0, 1, 1], [], []>} : vector<4x8xf32>, vector<8x8xf32>, vector<4x8xf32> -> vector<4x8xf32>
    %165 = arith.addf %157, %164 : vector<4x8xf32>
    %166 = vector.extract_strided_slice %106 {offsets = [1, 0, 0], sizes = [1, 4, 8], strides = [1, 1, 1]} : vector<2x4x8xf32> to vector<1x4x8xf32>
    %167 = vector.shape_cast %166 : vector<1x4x8xf32> to vector<4x8xf32>
    %cst_116 = arith.constant dense<0.000000e+00> : vector<4x8xf32>
    %168 = tpu.matmul %167, %102, %cst_116 {dimension_numbers = #tpu.dot_dimension_numbers<[1], [0], [0], [1], [0, 0, 1, 1], [], []>} : vector<4x8xf32>, vector<8x8xf32>, vector<4x8xf32> -> vector<4x8xf32>
    %169 = arith.addf %161, %168 : vector<4x8xf32>
    %170 = vector.extract_strided_slice %109 {offsets = [1, 0, 0], sizes = [1, 4, 8], strides = [1, 1, 1]} : vector<2x4x8xf32> to vector<1x4x8xf32>
    %171 = vector.shape_cast %170 : vector<1x4x8xf32> to vector<4x8xf32>
    %cst_117 = arith.constant dense<0.000000e+00> : vector<4x8xf32>
    %172 = tpu.matmul %171, %102, %cst_117 {dimension_numbers = #tpu.dot_dimension_numbers<[1], [0], [0], [1], [0, 0, 1, 1], [], []>} : vector<4x8xf32>, vector<8x8xf32>, vector<4x8xf32> -> vector<4x8xf32>
    %173 = arith.addf %165, %172 : vector<4x8xf32>
    %174 = vector.broadcast %103 : vector<1x8xf32> to vector<4x8xf32>
    %175 = arith.addf %169, %174 : vector<4x8xf32>
    %cst_118 = arith.constant 0.000000e+00 : f32
    %176 = vector.broadcast %cst_118 : f32 to vector<4x8xf32>
    %177 = arith.maximumf %175, %176 : vector<4x8xf32>
    %178 = vector.broadcast %103 : vector<1x8xf32> to vector<4x8xf32>
    %179 = arith.addf %173, %178 : vector<4x8xf32>
    %cst_119 = arith.constant 0.000000e+00 : f32
    %180 = vector.broadcast %cst_119 : f32 to vector<4x8xf32>
    %181 = arith.maximumf %179, %180 : vector<4x8xf32>
    %182 = arith.maximumf %177, %181 : vector<4x8xf32>
    %c1_120 = arith.constant 1 : index
    %c0_121 = arith.constant 0 : index
    %c0_122 = arith.constant 0 : index
    %183 = vector.load %arg13[%c1_120, %c0_121, %c0_122] : memref<2x4x8xf32, #tpu.memory_space<vmem>>, vector<1x4x8xf32>
    %184 = vector.shape_cast %183 : vector<1x4x8xf32> to vector<4x8xf32>
    %185 = vector.shape_cast %182 : vector<4x8xf32> to vector<1x4x8xf32>
    tpu.vector_store %arg13[%c1_120, %c0_121, %c0_122], %185 {strides = array<i32>} : memref<2x4x8xf32, #tpu.memory_space<vmem>>, vector<1x4x8xf32>,
    %c0_123 = arith.constant 0 : index
    %c0_124 = arith.constant 0 : index
    %c0_125 = arith.constant 0 : index
    %186 = vector.load %arg13[%c0_123, %c0_124, %c0_125] : memref<2x4x8xf32, #tpu.memory_space<vmem>>, vector<2x4x8xf32>
    %cst_126 = arith.constant 0.000000e+00 : f32
    %187 = vector.broadcast %cst_126 : f32 to vector<2x128xf32>
    %188 = vector.extract_strided_slice %186 {offsets = [0, 0, 0], sizes = [2, 1, 8], strides = [1, 1, 1]} : vector<2x4x8xf32> to vector<2x1x8xf32>
    %189 = vector.shape_cast %188 : vector<2x1x8xf32> to vector<2x8xf32>
    %c0_127 = arith.constant 0 : index
    %c0_128 = arith.constant 0 : index
    %c0_129 = arith.constant 0 : index
    %190 = vector.load %arg6[%c0_127, %c0_128, %c0_129] : memref<4x8x128xf32, #tpu.memory_space<vmem>>, vector<1x8x128xf32>
    %191 = vector.shape_cast %190 : vector<1x8x128xf32> to vector<8x128xf32>
    %cst_130 = arith.constant dense<0.000000e+00> : vector<2x128xf32>
    %192 = tpu.matmul %189, %191, %cst_130 {dimension_numbers = #tpu.dot_dimension_numbers<[1], [0], [0], [1], [0, 0, 1, 1], [], []>} : vector<2x8xf32>, vector<8x128xf32>, vector<2x128xf32> -> vector<2x128xf32>
    %193 = arith.addf %187, %192 : vector<2x128xf32>
    %194 = vector.extract_strided_slice %186 {offsets = [0, 1, 0], sizes = [2, 1, 8], strides = [1, 1, 1]} : vector<2x4x8xf32> to vector<2x1x8xf32>
    %195 = vector.shape_cast %194 : vector<2x1x8xf32> to vector<2x8xf32>
    %c1_131 = arith.constant 1 : index
    %c0_132 = arith.constant 0 : index
    %c0_133 = arith.constant 0 : index
    %196 = vector.load %arg6[%c1_131, %c0_132, %c0_133] : memref<4x8x128xf32, #tpu.memory_space<vmem>>, vector<1x8x128xf32>
    %197 = vector.shape_cast %196 : vector<1x8x128xf32> to vector<8x128xf32>
    %cst_134 = arith.constant dense<0.000000e+00> : vector<2x128xf32>
    %198 = tpu.matmul %195, %197, %cst_134 {dimension_numbers = #tpu.dot_dimension_numbers<[1], [0], [0], [1], [0, 0, 1, 1], [], []>} : vector<2x8xf32>, vector<8x128xf32>, vector<2x128xf32> -> vector<2x128xf32>
    %199 = arith.addf %193, %198 : vector<2x128xf32>
    %200 = vector.extract_strided_slice %186 {offsets = [0, 2, 0], sizes = [2, 1, 8], strides = [1, 1, 1]} : vector<2x4x8xf32> to vector<2x1x8xf32>
    %201 = vector.shape_cast %200 : vector<2x1x8xf32> to vector<2x8xf32>
    %c2_135 = arith.constant 2 : index
    %c0_136 = arith.constant 0 : index
    %c0_137 = arith.constant 0 : index
    %202 = vector.load %arg6[%c2_135, %c0_136, %c0_137] : memref<4x8x128xf32, #tpu.memory_space<vmem>>, vector<1x8x128xf32>
    %203 = vector.shape_cast %202 : vector<1x8x128xf32> to vector<8x128xf32>
    %cst_138 = arith.constant dense<0.000000e+00> : vector<2x128xf32>
    %204 = tpu.matmul %201, %203, %cst_138 {dimension_numbers = #tpu.dot_dimension_numbers<[1], [0], [0], [1], [0, 0, 1, 1], [], []>} : vector<2x8xf32>, vector<8x128xf32>, vector<2x128xf32> -> vector<2x128xf32>
    %205 = arith.addf %199, %204 : vector<2x128xf32>
    %206 = vector.extract_strided_slice %186 {offsets = [0, 3, 0], sizes = [2, 1, 8], strides = [1, 1, 1]} : vector<2x4x8xf32> to vector<2x1x8xf32>
    %207 = vector.shape_cast %206 : vector<2x1x8xf32> to vector<2x8xf32>
    %c3_139 = arith.constant 3 : index
    %c0_140 = arith.constant 0 : index
    %c0_141 = arith.constant 0 : index
    %208 = vector.load %arg6[%c3_139, %c0_140, %c0_141] : memref<4x8x128xf32, #tpu.memory_space<vmem>>, vector<1x8x128xf32>
    %209 = vector.shape_cast %208 : vector<1x8x128xf32> to vector<8x128xf32>
    %cst_142 = arith.constant dense<0.000000e+00> : vector<2x128xf32>
    %210 = tpu.matmul %207, %209, %cst_142 {dimension_numbers = #tpu.dot_dimension_numbers<[1], [0], [0], [1], [0, 0, 1, 1], [], []>} : vector<2x8xf32>, vector<8x128xf32>, vector<2x128xf32> -> vector<2x128xf32>
    %211 = arith.addf %205, %210 : vector<2x128xf32>
    %c0_143 = arith.constant 0 : index
    %c0_144 = arith.constant 0 : index
    %212 = vector.load %arg7[%c0_143, %c0_144] : memref<1x128xf32, #tpu.memory_space<vmem>>, vector<1x128xf32>
    %213 = vector.broadcast %212 : vector<1x128xf32> to vector<2x128xf32>
    %214 = arith.addf %211, %213 : vector<2x128xf32>
    %cst_145 = arith.constant 0.000000e+00 : f32
    %215 = vector.broadcast %cst_145 : f32 to vector<2x128xf32>
    %216 = arith.maximumf %214, %215 : vector<2x128xf32>
    %c0_146 = arith.constant 0 : index
    %c0_147 = arith.constant 0 : index
    %217 = vector.load %arg8[%c0_146, %c0_147] : memref<128x10xf32, #tpu.memory_space<vmem>>, vector<128x10xf32>
    %cst_148 = arith.constant dense<0.000000e+00> : vector<2x10xf32>
    %218 = tpu.matmul %216, %217, %cst_148 {dimension_numbers = #tpu.dot_dimension_numbers<[1], [0], [0], [1], [0, 0, 1, 1], [], []>} : vector<2x128xf32>, vector<128x10xf32>, vector<2x10xf32> -> vector<2x10xf32>
    %c0_149 = arith.constant 0 : index
    %c0_150 = arith.constant 0 : index
    %219 = vector.load %arg9[%c0_149, %c0_150] : memref<1x10xf32, #tpu.memory_space<vmem>>, vector<1x10xf32>
    %220 = vector.broadcast %219 : vector<1x10xf32> to vector<2x10xf32>
    %221 = arith.addf %218, %220 : vector<2x10xf32>
    %c0_151 = arith.constant 0 : index
    %c0_152 = arith.constant 0 : index
    %222 = vector.load %arg10[%c0_151, %c0_152] : memref<2x10xf32, #tpu.memory_space<vmem>>, vector<2x10xf32>
    tpu.vector_store %arg10[%c0_151, %c0_152], %221 {strides = array<i32>} : memref<2x10xf32, #tpu.memory_space<vmem>>, vector<2x10xf32>,
    return
  }
  func.func @transform_0(%arg0: i32) -> (i32, i32, i32) {
    %c0_i32 = arith.constant 0 : i32
    %c0_i32_0 = arith.constant 0 : i32
    %c0_i32_1 = arith.constant 0 : i32
    %c0_i32_2 = arith.constant 0 : i32
    return %c0_i32, %c0_i32_0, %c0_i32_1 : i32, i32, i32
  }
  func.func @transform_1(%arg0: i32) -> (i32, i32, i32) {
    %c0_i32 = arith.constant 0 : i32
    %c0_i32_0 = arith.constant 0 : i32
    %c0_i32_1 = arith.constant 0 : i32
    %c0_i32_2 = arith.constant 0 : i32
    return %c0_i32, %c0_i32_0, %c0_i32_1 : i32, i32, i32
  }
  func.func @transform_2(%arg0: i32) -> (i32, i32, i32) {
    %c0_i32 = arith.constant 0 : i32
    %c0_i32_0 = arith.constant 0 : i32
    %c0_i32_1 = arith.constant 0 : i32
    %c0_i32_2 = arith.constant 0 : i32
    return %c0_i32, %c0_i32_0, %c0_i32_1 : i32, i32, i32
  }
  func.func @transform_3(%arg0: i32) -> (i32, i32) {
    %c0_i32 = arith.constant 0 : i32
    %c0_i32_0 = arith.constant 0 : i32
    %c0_i32_1 = arith.constant 0 : i32
    return %c0_i32, %c0_i32_0 : i32, i32
  }
  func.func @transform_4(%arg0: i32) -> (i32, i32) {
    %c0_i32 = arith.constant 0 : i32
    %c0_i32_0 = arith.constant 0 : i32
    %c0_i32_1 = arith.constant 0 : i32
    return %c0_i32, %c0_i32_0 : i32, i32
  }
  func.func @transform_5(%arg0: i32) -> (i32, i32, i32) {
    %c0_i32 = arith.constant 0 : i32
    %c0_i32_0 = arith.constant 0 : i32
    %c0_i32_1 = arith.constant 0 : i32
    %c0_i32_2 = arith.constant 0 : i32
    return %c0_i32, %c0_i32_0, %c0_i32_1 : i32, i32, i32
  }
  func.func @transform_6(%arg0: i32) -> (i32, i32) {
    %c0_i32 = arith.constant 0 : i32
    %c0_i32_0 = arith.constant 0 : i32
    %c0_i32_1 = arith.constant 0 : i32
    return %c0_i32, %c0_i32_0 : i32, i32
  }
  func.func @transform_7(%arg0: i32) -> (i32, i32) {
    %c0_i32 = arith.constant 0 : i32
    %c0_i32_0 = arith.constant 0 : i32
    %c0_i32_1 = arith.constant 0 : i32
    return %c0_i32, %c0_i32_0 : i32, i32
  }
  func.func @transform_8(%arg0: i32) -> (i32, i32) {
    %c0_i32 = arith.constant 0 : i32
    %c0_i32_0 = arith.constant 0 : i32
    %c0_i32_1 = arith.constant 0 : i32
    return %c0_i32, %c0_i32_0 : i32, i32
  }
  func.func @transform_9(%arg0: i32) -> (i32, i32) {
    %c0_i32 = arith.constant 0 : i32
    %c0_i32_0 = arith.constant 0 : i32
    %c0_i32_1 = arith.constant 0 : i32
    return %c0_i32, %c0_i32_0 : i32, i32
  }
}

</mosaic_0001>

<llo_original>
// kernel: tpu_custom_call.1
$region0: #{tpu_custom_call.1}
  #allocation0 [shape = 'u32[]', space=smem, size = 0x4, offset = 0x4, fixed_abs, tag = 'smem constant byte address 0x4 - core index']
  #allocation1 [shape = 'u32[144,128]{1,0:T(1,128)}', space=vmem, size = 0x12000, scoped, tag = 'internal scratch']
  #allocation2 [shape = 'f32[2,18,4]{2,1,0:T(8,128)}', space=vmem, size = 0x6000, scoped, tag = 'scratch operand']
  #allocation3 [shape = 'f32[2,10,8]{2,1,0:T(8,128)}', space=vmem, size = 0x4000, scoped, tag = 'scratch operand']
  #allocation4 [shape = 'f32[2,4,8]{2,1,0:T(4,128)}', space=vmem, size = 0x1000, scoped, tag = 'scratch operand']
  %s0 = inlined_call_operand.vmem [shape: f32[2,16,4], index: 0, kind: input, shape index: {}]
  %s1 = inlined_call_operand.vmem [shape: f32[3,4,8], index: 1, kind: input, shape index: {}]
  %s2 = inlined_call_operand.vmem [shape: f32[3,8,8], index: 2, kind: input, shape index: {}]
  %s3 = inlined_call_operand.vmem [shape: f32[1,8], index: 3, kind: input, shape index: {}]
  %s4 = inlined_call_operand.vmem [shape: f32[1,8], index: 4, kind: input, shape index: {}]
  %s5 = inlined_call_operand.vmem [shape: f32[4,8,128], index: 5, kind: input, shape index: {}]
  %s6 = inlined_call_operand.vmem [shape: f32[1,128], index: 6, kind: input, shape index: {}]
  %s7 = inlined_call_operand.vmem [shape: f32[128,10], index: 7, kind: input, shape index: {}]
  %s8 = inlined_call_operand.vmem [shape: f32[1,10], index: 8, kind: input, shape index: {}]
  %s9 = inlined_call_operand.hbm [shape: f32[2,10], index: 9, kind: output, shape index: {}]
  %s10 = sld [smem:[#allocation0]]
  $region46: #{tpu_custom_call.1} parent=0
    _
  %s12 = ssub.s32 1, %s10
  %s13 = scalar_select 0, %s12, %s10
  $region1: #{tpu_custom_call.1} parent=0
    #allocation5 [shape = 'u8[1024]{0}', space=vmem, size = 0x400, scoped, tag = 'output window, operand 0, single buffered']
    #allocation6 [shape = 's32[1]{0}', space=sflag, size = 0x4, scoped, tag = 'scoped memory for tpu_custom_call.1']
    %14 = vsyncpa [#allocation6], 0
    // Predicated region
    $region2: #{tpu_custom_call.1} parent=1 // pred_check
      _
    $region3: #{tpu_custom_call.1} parent=1 // pred_check_branch
      %16 = sbr.rel (0) target = $region5
    $region4: #{tpu_custom_call.1} parent=1 // pred_region
      _
    $region5: #{tpu_custom_call.1} parent=1 // pred_fallthru
      _
    // Predicated region
    $region6: #{tpu_custom_call.1} parent=1 // pred_check
      _
    $region7: #{tpu_custom_call.1} parent=1 // pred_check_branch
      %18 = sbr.rel (0) target = $region9
    $region8: #{tpu_custom_call.1} parent=1 // pred_region
      _
    $region9: #{tpu_custom_call.1} parent=1 // pred_fallthru
      _
    // Predicated region
    $region10: #{tpu_custom_call.1} parent=1 // pred_check
      _
    $region11: #{tpu_custom_call.1} parent=1 // pred_check_branch
      %20 = sbr.rel (0) target = $region13
    $region12: #{tpu_custom_call.1} parent=1 // pred_region
      _
    $region13: #{tpu_custom_call.1} parent=1 // pred_fallthru
      _
    // Predicated region
    $region14: #{tpu_custom_call.1} parent=1 // pred_check
      _
    $region15: #{tpu_custom_call.1} parent=1 // pred_check_branch
      %22 = sbr.rel (0) target = $region17
    $region16: #{tpu_custom_call.1} parent=1 // pred_region
      _
    $region17: #{tpu_custom_call.1} parent=1 // pred_fallthru
      _
    // Predicated region
    $region18: #{tpu_custom_call.1} parent=1 // pred_check
      _
    $region19: #{tpu_custom_call.1} parent=1 // pred_check_branch
      %24 = sbr.rel (0) target = $region21
    $region20: #{tpu_custom_call.1} parent=1 // pred_region
      _
    $region21: #{tpu_custom_call.1} parent=1 // pred_fallthru
      _
    // Predicated region
    $region22: #{tpu_custom_call.1} parent=1 // pred_check
      _
    $region23: #{tpu_custom_call.1} parent=1 // pred_check_branch
      %26 = sbr.rel (0) target = $region25
    $region24: #{tpu_custom_call.1} parent=1 // pred_region
      _
    $region25: #{tpu_custom_call.1} parent=1 // pred_fallthru
      _
    // Predicated region
    $region26: #{tpu_custom_call.1} parent=1 // pred_check
      _
    $region27: #{tpu_custom_call.1} parent=1 // pred_check_branch
      %28 = sbr.rel (0) target = $region29
    $region28: #{tpu_custom_call.1} parent=1 // pred_region
      _
    $region29: #{tpu_custom_call.1} parent=1 // pred_fallthru
      _
    // Predicated region
    $region30: #{tpu_custom_call.1} parent=1 // pred_check
      _
    $region31: #{tpu_custom_call.1} parent=1 // pred_check_branch
      %30 = sbr.rel (0) target = $region33
    $region32: #{tpu_custom_call.1} parent=1 // pred_region
      _
    $region33: #{tpu_custom_call.1} parent=1 // pred_fallthru
      _
    // Predicated region
    $region34: #{tpu_custom_call.1} parent=1 // pred_check
      _
    $region35: #{tpu_custom_call.1} parent=1 // pred_check_branch
      %32 = sbr.rel (0) target = $region37
    $region36: #{tpu_custom_call.1} parent=1 // pred_region
      _
    $region37: #{tpu_custom_call.1} parent=1 // pred_fallthru
      _
    %vm33 = vcmask 24576
    %34 = vst.msk [vmem:[#allocation2] sm:$0x1] %vm33, 0.0
    %35 = vst.msk [vmem:[#allocation2 + $0x18] sm:$0x1] %vm33, 0.0
    %36 = vst.msk [vmem:[#allocation2 + $0x11] sm:$0x1] %vm33, 0.0
    %37 = vst.msk [vmem:[#allocation2 + $0x29] sm:$0x1] %vm33, 0.0
    %vm38 = vcmask 57344
    %39 = vst.msk [vmem:[#allocation3] sm:$0x1] %vm38, 0.0
    %40 = vst.msk [vmem:[#allocation3 + $0x10] sm:$0x1] %vm38, 0.0
    %41 = vst.msk [vmem:[#allocation3 + $0x9] sm:$0x1] %vm38, 0.0
    %42 = vst.msk [vmem:[#allocation3 + $0x19] sm:$0x1] %vm38, 0.0
    %v43 = vld [vmem:[%s0] sm:$0xff]
    %v44 = vld [vmem:[%s0 + $0x8] sm:$0xff]
    %v45 = vld [vmem:[%s0 + $0x10] sm:$0xff]
    %v46 = vld [vmem:[%s0 + $0x18] sm:$0xff]
    %vm47 = vcmask 31744
    %48 = vst.msk [vmem:[#allocation2 + $0x1] sm:$0xff] %vm47, %v43
    %49 = vst.msk [vmem:[#allocation2 + $0x9] sm:$0xff] %vm47, %v44
    %50 = vst.msk [vmem:[#allocation2 + $0x19] sm:$0xff] %vm47, %v45
    %51 = vst.msk [vmem:[#allocation2 + $0x21] sm:$0xff] %vm47, %v46
    %v52 = vld [vmem:[%s1] sm:$0xf]
    %s53 = scalar_lea.vmem %s1, 4
    %v54 = vld [vmem:[%s53] sm:$0xf]
    %s55 = scalar_lea.vmem %s1, 8
    %v56 = vld [vmem:[%s55] sm:$0xf]
    %v57 = vld [vmem:[%s3] sm:$0x1]
    %v58 = vld [vmem:[#allocation2] ss:$2 sm:$0xff]
    %s59 = scalar_lea.vmem [#allocation2], 24
    %v60 = vld [vmem:[%s59] ss:$2 sm:$0xff]
    %s61 = scalar_lea.vmem [#allocation2], 1
    %v62 = vld [vmem:[%s61] ss:$2 sm:$0xff]
    %s63 = scalar_lea.vmem [#allocation2], 25
    %v64 = vld [vmem:[%s63] ss:$2 sm:$0xff]
    %s65 = scalar_lea.vmem [#allocation2], 2
    %v66 = vld [vmem:[%s65] ss:$2 sm:$0xff]
    %s67 = scalar_lea.vmem [#allocation2], 26
    %v68 = vld [vmem:[%s67] ss:$2 sm:$0xff]
    %s69 = scalar_lea.vmem [#allocation2], 3
    %v70 = vld [vmem:[%s69] ss:$2 sm:$0xff]
    %s71 = scalar_lea.vmem [#allocation2], 27
    %v72 = vld [vmem:[%s71] ss:$2 sm:$0xff]
    %v74 = vsel %vm47, %v62, 0
    %vm76 = vcmask 1043456
    %v78 = vsel %vm76, %v54, 0
    %80 = vmatprep.subr.mxu0 0.0
    %81 = vmatpush1.msra.mxu0 0.0
    %82 = vmatprep.subr.mxu0 0.0
    %83 = vmatpush1.msra.mxu0 0.0
    %84 = vmatprep.subr.mxu0 0.0
    %85 = vmatpush1.msra.mxu0 0.0
    %86 = vmatprep.subr.mxu0 0.0
    %87 = vmatpush1.msra.mxu0 0.0
    %88 = vmatprep.subr.mxu0 0.0
    %89 = vmatpush1.msra.mxu0 0.0
    %90 = vmatprep.subr.mxu0 0.0
    %91 = vmatpush1.msra.mxu0 0.0
    %92 = vmatprep.subr.mxu0 0.0
    %93 = vmatpush1.msra.mxu0 0.0
    %94 = vmatprep.subr.mxu0 0.0
    %95 = vmatpush1.msra.mxu0 0.0
    %96 = vmatprep.subr.mxu0 0.0
    %97 = vmatpush1.msra.mxu0 0.0
    %98 = vmatprep.subr.mxu0 0.0
    %99 = vmatpush1.msra.mxu0 0.0
    %100 = vmatprep.subr.mxu0 0.0
    %101 = vmatpush1.msra.mxu0 0.0
    %102 = vmatprep.subr.mxu0 0.0
    %103 = vmatpush1.msra.mxu0 0.0
    %104 = vmatprep.subr.mxu0 0.0
    %105 = vmatpush1.msra.mxu0 0.0
    %106 = vmatprep.subr.mxu0 0.0
    %107 = vmatpush1.msra.mxu0 0.0
    %108 = vmatprep.subr.mxu0 0.0
    %109 = vmatpush1.msra.mxu0 0.0
    %110 = vmatprep.subr.mxu0 0.0
    %111 = vmatpush1.msra.mxu0 %v78
    %112 = vmatprep.subr.mxu0 0.0
    %113 = vmatpush2.msra.mxu0 0.0
    %114 = vmatprep.subr.mxu0 0.0
    %115 = vmatpush2.msra.mxu0 0.0
    %116 = vmatprep.subr.mxu0 0.0
    %117 = vmatpush2.msra.mxu0 0.0
    %118 = vmatprep.subr.mxu0 0.0
    %119 = vmatpush2.msra.mxu0 0.0
    %120 = vmatprep.subr.mxu0 0.0
    %121 = vmatpush2.msra.mxu0 0.0
    %122 = vmatprep.subr.mxu0 0.0
    %123 = vmatpush2.msra.mxu0 0.0
    %124 = vmatprep.subr.mxu0 0.0
    %125 = vmatpush2.msra.mxu0 0.0
    %126 = vmatprep.subr.mxu0 0.0
    %127 = vmatpush2.msra.mxu0 0.0
    %128 = vmatprep.subr.mxu0 0.0
    %129 = vmatpush2.msra.mxu0 0.0
    %130 = vmatprep.subr.mxu0 0.0
    %131 = vmatpush2.msra.mxu0 0.0
    %132 = vmatprep.subr.mxu0 0.0
    %133 = vmatpush2.msra.mxu0 0.0
    %134 = vmatprep.subr.mxu0 0.0
    %135 = vmatpush2.msra.mxu0 0.0
    %136 = vmatprep.subr.mxu0 0.0
    %137 = vmatpush2.msra.mxu0 0.0
    %138 = vmatprep.subr.mxu0 0.0
    %139 = vmatpush2.msra.mxu0 0.0
    %140 = vmatprep.subr.mxu0 0.0
    %141 = vmatpush2.msra.mxu0 0.0
    %142 = vmatprep.subr.mxu0 0.0
    %143 = vmatpush2.msra.mxu0 0.0
    %144 = vmatprep.mubr.f32.mxu0 0.0
    %145 = vmatmul.mubr.f32.gmra.mxu0 %v74
    %v146 = vpop.f32.mrf.mxu0
    %v147 = vadd.f32 0.0, %v146
    %v148 = vpop.f32.mrf.mxu0
    %149 = vdwg.mxu0
    %v151 = vsel %vm47, %v58, 0
    %v154 = vsel %vm76, %v52, 0
    %156 = vmatprep.subr.mxu0 0.0
    %157 = vmatpush1.msra.mxu0 0.0
    %158 = vmatprep.subr.mxu0 0.0
    %159 = vmatpush1.msra.mxu0 0.0
    %160 = vmatprep.subr.mxu0 0.0
    %161 = vmatpush1.msra.mxu0 0.0
    %162 = vmatprep.subr.mxu0 0.0
    %163 = vmatpush1.msra.mxu0 0.0
    %164 = vmatprep.subr.mxu0 0.0
    %165 = vmatpush1.msra.mxu0 0.0
    %166 = vmatprep.subr.mxu0 0.0
    %167 = vmatpush1.msra.mxu0 0.0
    %168 = vmatprep.subr.mxu0 0.0
    %169 = vmatpush1.msra.mxu0 0.0
    %170 = vmatprep.subr.mxu0 0.0
    %171 = vmatpush1.msra.mxu0 0.0
    %172 = vmatprep.subr.mxu0 0.0
    %173 = vmatpush1.msra.mxu0 0.0
    %174 = vmatprep.subr.mxu0 0.0
    %175 = vmatpush1.msra.mxu0 0.0
    %176 = vmatprep.subr.mxu0 0.0
    %177 = vmatpush1.msra.mxu0 0.0
    %178 = vmatprep.subr.mxu0 0.0
    %179 = vmatpush1.msra.mxu0 0.0
    %180 = vmatprep.subr.mxu0 0.0
    %181 = vmatpush1.msra.mxu0 0.0
    %182 = vmatprep.subr.mxu0 0.0
    %183 = vmatpush1.msra.mxu0 0.0
    %184 = vmatprep.subr.mxu0 0.0
    %185 = vmatpush1.msra.mxu0 0.0
    %186 = vmatprep.subr.mxu0 0.0
    %187 = vmatpush1.msra.mxu0 %v154
    %188 = vmatprep.subr.mxu0 0.0
    %189 = vmatpush2.msra.mxu0 0.0
    %190 = vmatprep.subr.mxu0 0.0
    %191 = vmatpush2.msra.mxu0 0.0
    %192 = vmatprep.subr.mxu0 0.0
    %193 = vmatpush2.msra.mxu0 0.0
    %194 = vmatprep.subr.mxu0 0.0
    %195 = vmatpush2.msra.mxu0 0.0
    %196 = vmatprep.subr.mxu0 0.0
    %197 = vmatpush2.msra.mxu0 0.0
    %198 = vmatprep.subr.mxu0 0.0
    %199 = vmatpush2.msra.mxu0 0.0
    %200 = vmatprep.subr.mxu0 0.0
    %201 = vmatpush2.msra.mxu0 0.0
    %202 = vmatprep.subr.mxu0 0.0
    %203 = vmatpush2.msra.mxu0 0.0
    %204 = vmatprep.subr.mxu0 0.0
    %205 = vmatpush2.msra.mxu0 0.0
    %206 = vmatprep.subr.mxu0 0.0
    %207 = vmatpush2.msra.mxu0 0.0
    %208 = vmatprep.subr.mxu0 0.0
    %209 = vmatpush2.msra.mxu0 0.0
    %210 = vmatprep.subr.mxu0 0.0
    %211 = vmatpush2.msra.mxu0 0.0
    %212 = vmatprep.subr.mxu0 0.0
    %213 = vmatpush2.msra.mxu0 0.0
    %214 = vmatprep.subr.mxu0 0.0
    %215 = vmatpush2.msra.mxu0 0.0
    %216 = vmatprep.subr.mxu0 0.0
    %217 = vmatpush2.msra.mxu0 0.0
    %218 = vmatprep.subr.mxu0 0.0
    %219 = vmatpush2.msra.mxu0 0.0
    %220 = vmatprep.mubr.f32.mxu0 0.0
    %221 = vmatmul.mubr.f32.gmra.mxu0 %v151
    %v222 = vpop.f32.mrf.mxu0
    %v223 = vadd.f32 %v147, %v222
    %v224 = vpop.f32.mrf.mxu0
    %225 = vdwg.mxu0
    %v227 = vsel %vm47, %v66, 0
    %229 = vmatprep.subr.mxu0 0.0
    %230 = vmatpush1.msra.mxu0 0.0
    %231 = vmatprep.subr.mxu0 0.0
    %232 = vmatpush1.msra.mxu0 0.0
    %233 = vmatprep.subr.mxu0 0.0
    %234 = vmatpush1.msra.mxu0 0.0
    %235 = vmatprep.subr.mxu0 0.0
    %236 = vmatpush1.msra.mxu0 0.0
    %237 = vmatprep.subr.mxu0 0.0
    %238 = vmatpush1.msra.mxu0 0.0
    %239 = vmatprep.subr.mxu0 0.0
    %240 = vmatpush1.msra.mxu0 0.0
    %241 = vmatprep.subr.mxu0 0.0
    %242 = vmatpush1.msra.mxu0 0.0
    %243 = vmatprep.subr.mxu0 0.0
    %244 = vmatpush1.msra.mxu0 0.0
    %245 = vmatprep.subr.mxu0 0.0
    %246 = vmatpush1.msra.mxu0 0.0
    %247 = vmatprep.subr.mxu0 0.0
    %248 = vmatpush1.msra.mxu0 0.0
    %249 = vmatprep.subr.mxu0 0.0
    %250 = vmatpush1.msra.mxu0 0.0
    %251 = vmatprep.subr.mxu0 0.0
    %252 = vmatpush1.msra.mxu0 0.0
    %253 = vmatprep.subr.mxu0 0.0
    %254 = vmatpush1.msra.mxu0 0.0
    %255 = vmatprep.subr.mxu0 0.0
    %256 = vmatpush1.msra.mxu0 0.0
    %257 = vmatprep.subr.mxu0 0.0
    %258 = vmatpush1.msra.mxu0 0.0
    %259 = vmatprep.subr.mxu0 0.0
    %260 = vmatpush1.msra.mxu0 %v78
    %261 = vmatprep.subr.mxu0 0.0
    %262 = vmatpush2.msra.mxu0 0.0
    %263 = vmatprep.subr.mxu0 0.0
    %264 = vmatpush2.msra.mxu0 0.0
    %265 = vmatprep.subr.mxu0 0.0
    %266 = vmatpush2.msra.mxu0 0.0
    %267 = vmatprep.subr.mxu0 0.0
    %268 = vmatpush2.msra.mxu0 0.0
    %269 = vmatprep.subr.mxu0 0.0
    %270 = vmatpush2.msra.mxu0 0.0
    %271 = vmatprep.subr.mxu0 0.0
    %272 = vmatpush2.msra.mxu0 0.0
    %273 = vmatprep.subr.mxu0 0.0
    %274 = vmatpush2.msra.mxu0 0.0
    %275 = vmatprep.subr.mxu0 0.0
    %276 = vmatpush2.msra.mxu0 0.0
    %277 = vmatprep.subr.mxu0 0.0
    %278 = vmatpush2.msra.mxu0 0.0
    %279 = vmatprep.subr.mxu0 0.0
    %280 = vmatpush2.msra.mxu0 0.0
    %281 = vmatprep.subr.mxu0 0.0
    %282 = vmatpush2.msra.mxu0 0.0
    %283 = vmatprep.subr.mxu0 0.0
    %284 = vmatpush2.msra.mxu0 0.0
    %285 = vmatprep.subr.mxu0 0.0
    %286 = vmatpush2.msra.mxu0 0.0
    %287 = vmatprep.subr.mxu0 0.0
    %288 = vmatpush2.msra.mxu0 0.0
    %289 = vmatprep.subr.mxu0 0.0
    %290 = vmatpush2.msra.mxu0 0.0
    %291 = vmatprep.subr.mxu0 0.0
    %292 = vmatpush2.msra.mxu0 0.0
    %293 = vmatprep.mubr.f32.mxu0 0.0
    %294 = vmatmul.mubr.f32.gmra.mxu0 %v227
    %v295 = vpop.f32.mrf.mxu0
    %v296 = vadd.f32 0.0, %v295
    %v297 = vpop.f32.mrf.mxu0
    %298 = vdwg.mxu0
    %299 = vmatprep.subr.mxu0 0.0
    %300 = vmatpush1.msra.mxu0 0.0
    %301 = vmatprep.subr.mxu0 0.0
    %302 = vmatpush1.msra.mxu0 0.0
    %303 = vmatprep.subr.mxu0 0.0
    %304 = vmatpush1.msra.mxu0 0.0
    %305 = vmatprep.subr.mxu0 0.0
    %306 = vmatpush1.msra.mxu0 0.0
    %307 = vmatprep.subr.mxu0 0.0
    %308 = vmatpush1.msra.mxu0 0.0
    %309 = vmatprep.subr.mxu0 0.0
    %310 = vmatpush1.msra.mxu0 0.0
    %311 = vmatprep.subr.mxu0 0.0
    %312 = vmatpush1.msra.mxu0 0.0
    %313 = vmatprep.subr.mxu0 0.0
    %314 = vmatpush1.msra.mxu0 0.0
    %315 = vmatprep.subr.mxu0 0.0
    %316 = vmatpush1.msra.mxu0 0.0
    %317 = vmatprep.subr.mxu0 0.0
    %318 = vmatpush1.msra.mxu0 0.0
    %319 = vmatprep.subr.mxu0 0.0
    %320 = vmatpush1.msra.mxu0 0.0
    %321 = vmatprep.subr.mxu0 0.0
    %322 = vmatpush1.msra.mxu0 0.0
    %323 = vmatprep.subr.mxu0 0.0
    %324 = vmatpush1.msra.mxu0 0.0
    %325 = vmatprep.subr.mxu0 0.0
    %326 = vmatpush1.msra.mxu0 0.0
    %327 = vmatprep.subr.mxu0 0.0
    %328 = vmatpush1.msra.mxu0 0.0
    %329 = vmatprep.subr.mxu0 0.0
    %330 = vmatpush1.msra.mxu0 %v154
    %331 = vmatprep.subr.mxu0 0.0
    %332 = vmatpush2.msra.mxu0 0.0
    %333 = vmatprep.subr.mxu0 0.0
    %334 = vmatpush2.msra.mxu0 0.0
    %335 = vmatprep.subr.mxu0 0.0
    %336 = vmatpush2.msra.mxu0 0.0
    %337 = vmatprep.subr.mxu0 0.0
    %338 = vmatpush2.msra.mxu0 0.0
    %339 = vmatprep.subr.mxu0 0.0
    %340 = vmatpush2.msra.mxu0 0.0
    %341 = vmatprep.subr.mxu0 0.0
    %342 = vmatpush2.msra.mxu0 0.0
    %343 = vmatprep.subr.mxu0 0.0
    %344 = vmatpush2.msra.mxu0 0.0
    %345 = vmatprep.subr.mxu0 0.0
    %346 = vmatpush2.msra.mxu0 0.0
    %347 = vmatprep.subr.mxu0 0.0
    %348 = vmatpush2.msra.mxu0 0.0
    %349 = vmatprep.subr.mxu0 0.0
    %350 = vmatpush2.msra.mxu0 0.0
    %351 = vmatprep.subr.mxu0 0.0
    %352 = vmatpush2.msra.mxu0 0.0
    %353 = vmatprep.subr.mxu0 0.0
    %354 = vmatpush2.msra.mxu0 0.0
    %355 = vmatprep.subr.mxu0 0.0
    %356 = vmatpush2.msra.mxu0 0.0
    %357 = vmatprep.subr.mxu0 0.0
    %358 = vmatpush2.msra.mxu0 0.0
    %359 = vmatprep.subr.mxu0 0.0
    %360 = vmatpush2.msra.mxu0 0.0
    %361 = vmatprep.subr.mxu0 0.0
    %362 = vmatpush2.msra.mxu0 0.0
    %363 = vmatprep.mubr.f32.mxu0 0.0
    %364 = vmatmul.mubr.f32.gmra.mxu0 %v74
    %v365 = vpop.f32.mrf.mxu0
    %v366 = vadd.f32 %v296, %v365
    %v367 = vpop.f32.mrf.mxu0
    %368 = vdwg.mxu0
    %v370 = vsel %vm76, %v56, 0
    %372 = vmatprep.subr.mxu0 0.0
    %373 = vmatpush1.msra.mxu0 0.0
    %374 = vmatprep.subr.mxu0 0.0
    %375 = vmatpush1.msra.mxu0 0.0
    %376 = vmatprep.subr.mxu0 0.0
    %377 = vmatpush1.msra.mxu0 0.0
    %378 = vmatprep.subr.mxu0 0.0
    %379 = vmatpush1.msra.mxu0 0.0
    %380 = vmatprep.subr.mxu0 0.0
    %381 = vmatpush1.msra.mxu0 0.0
    %382 = vmatprep.subr.mxu0 0.0
    %383 = vmatpush1.msra.mxu0 0.0
    %384 = vmatprep.subr.mxu0 0.0
    %385 = vmatpush1.msra.mxu0 0.0
    %386 = vmatprep.subr.mxu0 0.0
    %387 = vmatpush1.msra.mxu0 0.0
    %388 = vmatprep.subr.mxu0 0.0
    %389 = vmatpush1.msra.mxu0 0.0
    %390 = vmatprep.subr.mxu0 0.0
    %391 = vmatpush1.msra.mxu0 0.0
    %392 = vmatprep.subr.mxu0 0.0
    %393 = vmatpush1.msra.mxu0 0.0
    %394 = vmatprep.subr.mxu0 0.0
    %395 = vmatpush1.msra.mxu0 0.0
    %396 = vmatprep.subr.mxu0 0.0
    %397 = vmatpush1.msra.mxu0 0.0
    %398 = vmatprep.subr.mxu0 0.0
    %399 = vmatpush1.msra.mxu0 0.0
    %400 = vmatprep.subr.mxu0 0.0
    %401 = vmatpush1.msra.mxu0 0.0
    %402 = vmatprep.subr.mxu0 0.0
    %403 = vmatpush1.msra.mxu0 %v370
    %404 = vmatprep.subr.mxu0 0.0
    %405 = vmatpush2.msra.mxu0 0.0
    %406 = vmatprep.subr.mxu0 0.0
    %407 = vmatpush2.msra.mxu0 0.0
    %408 = vmatprep.subr.mxu0 0.0
    %409 = vmatpush2.msra.mxu0 0.0
    %410 = vmatprep.subr.mxu0 0.0
    %411 = vmatpush2.msra.mxu0 0.0
    %412 = vmatprep.subr.mxu0 0.0
    %413 = vmatpush2.msra.mxu0 0.0
    %414 = vmatprep.subr.mxu0 0.0
    %415 = vmatpush2.msra.mxu0 0.0
    %416 = vmatprep.subr.mxu0 0.0
    %417 = vmatpush2.msra.mxu0 0.0
    %418 = vmatprep.subr.mxu0 0.0
    %419 = vmatpush2.msra.mxu0 0.0
    %420 = vmatprep.subr.mxu0 0.0
    %421 = vmatpush2.msra.mxu0 0.0
    %422 = vmatprep.subr.mxu0 0.0
    %423 = vmatpush2.msra.mxu0 0.0
    %424 = vmatprep.subr.mxu0 0.0
    %425 = vmatpush2.msra.mxu0 0.0
    %426 = vmatprep.subr.mxu0 0.0
    %427 = vmatpush2.msra.mxu0 0.0
    %428 = vmatprep.subr.mxu0 0.0
    %429 = vmatpush2.msra.mxu0 0.0
    %430 = vmatprep.subr.mxu0 0.0
    %431 = vmatpush2.msra.mxu0 0.0
    %432 = vmatprep.subr.mxu0 0.0
    %433 = vmatpush2.msra.mxu0 0.0
    %434 = vmatprep.subr.mxu0 0.0
    %435 = vmatpush2.msra.mxu0 0.0
    %436 = vmatprep.mubr.f32.mxu0 0.0
    %437 = vmatmul.mubr.f32.gmra.mxu0 %v227
    %v438 = vpop.f32.mrf.mxu0
    %v439 = vadd.f32 0.0, %v438
    %v440 = vpop.f32.mrf.mxu0
    %441 = vdwg.mxu0
    %v442 = vadd.f32 %v223, %v439
    %v444 = vsel %vm47, %v70, 0
    %446 = vmatprep.subr.mxu0 0.0
    %447 = vmatpush1.msra.mxu0 0.0
    %448 = vmatprep.subr.mxu0 0.0
    %449 = vmatpush1.msra.mxu0 0.0
    %450 = vmatprep.subr.mxu0 0.0
    %451 = vmatpush1.msra.mxu0 0.0
    %452 = vmatprep.subr.mxu0 0.0
    %453 = vmatpush1.msra.mxu0 0.0
    %454 = vmatprep.subr.mxu0 0.0
    %455 = vmatpush1.msra.mxu0 0.0
    %456 = vmatprep.subr.mxu0 0.0
    %457 = vmatpush1.msra.mxu0 0.0
    %458 = vmatprep.subr.mxu0 0.0
    %459 = vmatpush1.msra.mxu0 0.0
    %460 = vmatprep.subr.mxu0 0.0
    %461 = vmatpush1.msra.mxu0 0.0
    %462 = vmatprep.subr.mxu0 0.0
    %463 = vmatpush1.msra.mxu0 0.0
    %464 = vmatprep.subr.mxu0 0.0
    %465 = vmatpush1.msra.mxu0 0.0
    %466 = vmatprep.subr.mxu0 0.0
    %467 = vmatpush1.msra.mxu0 0.0
    %468 = vmatprep.subr.mxu0 0.0
    %469 = vmatpush1.msra.mxu0 0.0
    %470 = vmatprep.subr.mxu0 0.0
    %471 = vmatpush1.msra.mxu0 0.0
    %472 = vmatprep.subr.mxu0 0.0
    %473 = vmatpush1.msra.mxu0 0.0
    %474 = vmatprep.subr.mxu0 0.0
    %475 = vmatpush1.msra.mxu0 0.0
    %476 = vmatprep.subr.mxu0 0.0
    %477 = vmatpush1.msra.mxu0 %v370
    %478 = vmatprep.subr.mxu0 0.0
    %479 = vmatpush2.msra.mxu0 0.0
    %480 = vmatprep.subr.mxu0 0.0
    %481 = vmatpush2.msra.mxu0 0.0
    %482 = vmatprep.subr.mxu0 0.0
    %483 = vmatpush2.msra.mxu0 0.0
    %484 = vmatprep.subr.mxu0 0.0
    %485 = vmatpush2.msra.mxu0 0.0
    %486 = vmatprep.subr.mxu0 0.0
    %487 = vmatpush2.msra.mxu0 0.0
    %488 = vmatprep.subr.mxu0 0.0
    %489 = vmatpush2.msra.mxu0 0.0
    %490 = vmatprep.subr.mxu0 0.0
    %491 = vmatpush2.msra.mxu0 0.0
    %492 = vmatprep.subr.mxu0 0.0
    %493 = vmatpush2.msra.mxu0 0.0
    %494 = vmatprep.subr.mxu0 0.0
    %495 = vmatpush2.msra.mxu0 0.0
    %496 = vmatprep.subr.mxu0 0.0
    %497 = vmatpush2.msra.mxu0 0.0
    %498 = vmatprep.subr.mxu0 0.0
    %499 = vmatpush2.msra.mxu0 0.0
    %500 = vmatprep.subr.mxu0 0.0
    %501 = vmatpush2.msra.mxu0 0.0
    %502 = vmatprep.subr.mxu0 0.0
    %503 = vmatpush2.msra.mxu0 0.0
    %504 = vmatprep.subr.mxu0 0.0
    %505 = vmatpush2.msra.mxu0 0.0
    %506 = vmatprep.subr.mxu0 0.0
    %507 = vmatpush2.msra.mxu0 0.0
    %508 = vmatprep.subr.mxu0 0.0
    %509 = vmatpush2.msra.mxu0 0.0
    %510 = vmatprep.mubr.f32.mxu0 0.0
    %511 = vmatmul.mubr.f32.gmra.mxu0 %v444
    %v512 = vpop.f32.mrf.mxu0
    %v513 = vadd.f32 0.0, %v512
    %v514 = vpop.f32.mrf.mxu0
    %515 = vdwg.mxu0
    %v516 = vadd.f32 %v366, %v513
    %v518 = vlaneseq
    %v519 = vshrl.u32 %v518, 7
    %v520 = vsub.s32 0, %v519
    %v521 = vrot.slane %v57, %v520
    %v523 = vadd.f32 %v442, %v521
    %v524 = vmax.f32 %v523, 0.0
    %v525 = vadd.f32 %v516, %v521
    %v526 = vmax.f32 %v525, 0.0
    %v527 = vmax.f32 %v524, %v526
    %vm528 = vcmask 64512
    %529 = vst.msk [vmem:[#allocation3 + $0x1] sm:$0xff] %vm528, %v527
    %v531 = vsel %vm47, %v64, 0
    %533 = vmatprep.subr.mxu0 0.0
    %534 = vmatpush1.msra.mxu0 0.0
    %535 = vmatprep.subr.mxu0 0.0
    %536 = vmatpush1.msra.mxu0 0.0
    %537 = vmatprep.subr.mxu0 0.0
    %538 = vmatpush1.msra.mxu0 0.0
    %539 = vmatprep.subr.mxu0 0.0
    %540 = vmatpush1.msra.mxu0 0.0
    %541 = vmatprep.subr.mxu0 0.0
    %542 = vmatpush1.msra.mxu0 0.0
    %543 = vmatprep.subr.mxu0 0.0
    %544 = vmatpush1.msra.mxu0 0.0
    %545 = vmatprep.subr.mxu0 0.0
    %546 = vmatpush1.msra.mxu0 0.0
    %547 = vmatprep.subr.mxu0 0.0
    %548 = vmatpush1.msra.mxu0 0.0
    %549 = vmatprep.subr.mxu0 0.0
    %550 = vmatpush1.msra.mxu0 0.0
    %551 = vmatprep.subr.mxu0 0.0
    %552 = vmatpush1.msra.mxu0 0.0
    %553 = vmatprep.subr.mxu0 0.0
    %554 = vmatpush1.msra.mxu0 0.0
    %555 = vmatprep.subr.mxu0 0.0
    %556 = vmatpush1.msra.mxu0 0.0
    %557 = vmatprep.subr.mxu0 0.0
    %558 = vmatpush1.msra.mxu0 0.0
    %559 = vmatprep.subr.mxu0 0.0
    %560 = vmatpush1.msra.mxu0 0.0
    %561 = vmatprep.subr.mxu0 0.0
    %562 = vmatpush1.msra.mxu0 0.0
    %563 = vmatprep.subr.mxu0 0.0
    %564 = vmatpush1.msra.mxu0 %v78
    %565 = vmatprep.subr.mxu0 0.0
    %566 = vmatpush2.msra.mxu0 0.0
    %567 = vmatprep.subr.mxu0 0.0
    %568 = vmatpush2.msra.mxu0 0.0
    %569 = vmatprep.subr.mxu0 0.0
    %570 = vmatpush2.msra.mxu0 0.0
    %571 = vmatprep.subr.mxu0 0.0
    %572 = vmatpush2.msra.mxu0 0.0
    %573 = vmatprep.subr.mxu0 0.0
    %574 = vmatpush2.msra.mxu0 0.0
    %575 = vmatprep.subr.mxu0 0.0
    %576 = vmatpush2.msra.mxu0 0.0
    %577 = vmatprep.subr.mxu0 0.0
    %578 = vmatpush2.msra.mxu0 0.0
    %579 = vmatprep.subr.mxu0 0.0
    %580 = vmatpush2.msra.mxu0 0.0
    %581 = vmatprep.subr.mxu0 0.0
    %582 = vmatpush2.msra.mxu0 0.0
    %583 = vmatprep.subr.mxu0 0.0
    %584 = vmatpush2.msra.mxu0 0.0
    %585 = vmatprep.subr.mxu0 0.0
    %586 = vmatpush2.msra.mxu0 0.0
    %587 = vmatprep.subr.mxu0 0.0
    %588 = vmatpush2.msra.mxu0 0.0
    %589 = vmatprep.subr.mxu0 0.0
    %590 = vmatpush2.msra.mxu0 0.0
    %591 = vmatprep.subr.mxu0 0.0
    %592 = vmatpush2.msra.mxu0 0.0
    %593 = vmatprep.subr.mxu0 0.0
    %594 = vmatpush2.msra.mxu0 0.0
    %595 = vmatprep.subr.mxu0 0.0
    %596 = vmatpush2.msra.mxu0 0.0
    %597 = vmatprep.mubr.f32.mxu0 0.0
    %598 = vmatmul.mubr.f32.gmra.mxu0 %v531
    %v599 = vpop.f32.mrf.mxu0
    %v600 = vadd.f32 0.0, %v599
    %v601 = vpop.f32.mrf.mxu0
    %602 = vdwg.mxu0
    %v604 = vsel %vm47, %v60, 0
    %606 = vmatprep.subr.mxu0 0.0
    %607 = vmatpush1.msra.mxu0 0.0
    %608 = vmatprep.subr.mxu0 0.0
    %609 = vmatpush1.msra.mxu0 0.0
    %610 = vmatprep.subr.mxu0 0.0
    %611 = vmatpush1.msra.mxu0 0.0
    %612 = vmatprep.subr.mxu0 0.0
    %613 = vmatpush1.msra.mxu0 0.0
    %614 = vmatprep.subr.mxu0 0.0
    %615 = vmatpush1.msra.mxu0 0.0
    %616 = vmatprep.subr.mxu0 0.0
    %617 = vmatpush1.msra.mxu0 0.0
    %618 = vmatprep.subr.mxu0 0.0
    %619 = vmatpush1.msra.mxu0 0.0
    %620 = vmatprep.subr.mxu0 0.0
    %621 = vmatpush1.msra.mxu0 0.0
    %622 = vmatprep.subr.mxu0 0.0
    %623 = vmatpush1.msra.mxu0 0.0
    %624 = vmatprep.subr.mxu0 0.0
    %625 = vmatpush1.msra.mxu0 0.0
    %626 = vmatprep.subr.mxu0 0.0
    %627 = vmatpush1.msra.mxu0 0.0
    %628 = vmatprep.subr.mxu0 0.0
    %629 = vmatpush1.msra.mxu0 0.0
    %630 = vmatprep.subr.mxu0 0.0
    %631 = vmatpush1.msra.mxu0 0.0
    %632 = vmatprep.subr.mxu0 0.0
    %633 = vmatpush1.msra.mxu0 0.0
    %634 = vmatprep.subr.mxu0 0.0
    %635 = vmatpush1.msra.mxu0 0.0
    %636 = vmatprep.subr.mxu0 0.0
    %637 = vmatpush1.msra.mxu0 %v154
    %638 = vmatprep.subr.mxu0 0.0
    %639 = vmatpush2.msra.mxu0 0.0
    %640 = vmatprep.subr.mxu0 0.0
    %641 = vmatpush2.msra.mxu0 0.0
    %642 = vmatprep.subr.mxu0 0.0
    %643 = vmatpush2.msra.mxu0 0.0
    %644 = vmatprep.subr.mxu0 0.0
    %645 = vmatpush2.msra.mxu0 0.0
    %646 = vmatprep.subr.mxu0 0.0
    %647 = vmatpush2.msra.mxu0 0.0
    %648 = vmatprep.subr.mxu0 0.0
    %649 = vmatpush2.msra.mxu0 0.0
    %650 = vmatprep.subr.mxu0 0.0
    %651 = vmatpush2.msra.mxu0 0.0
    %652 = vmatprep.subr.mxu0 0.0
    %653 = vmatpush2.msra.mxu0 0.0
    %654 = vmatprep.subr.mxu0 0.0
    %655 = vmatpush2.msra.mxu0 0.0
    %656 = vmatprep.subr.mxu0 0.0
    %657 = vmatpush2.msra.mxu0 0.0
    %658 = vmatprep.subr.mxu0 0.0
    %659 = vmatpush2.msra.mxu0 0.0
    %660 = vmatprep.subr.mxu0 0.0
    %661 = vmatpush2.msra.mxu0 0.0
    %662 = vmatprep.subr.mxu0 0.0
    %663 = vmatpush2.msra.mxu0 0.0
    %664 = vmatprep.subr.mxu0 0.0
    %665 = vmatpush2.msra.mxu0 0.0
    %666 = vmatprep.subr.mxu0 0.0
    %667 = vmatpush2.msra.mxu0 0.0
    %668 = vmatprep.subr.mxu0 0.0
    %669 = vmatpush2.msra.mxu0 0.0
    %670 = vmatprep.mubr.f32.mxu0 0.0
    %671 = vmatmul.mubr.f32.gmra.mxu0 %v604
    %v672 = vpop.f32.mrf.mxu0
    %v673 = vadd.f32 %v600, %v672
    %v674 = vpop.f32.mrf.mxu0
    %675 = vdwg.mxu0
    %v677 = vsel %vm47, %v68, 0
    %679 = vmatprep.subr.mxu0 0.0
    %680 = vmatpush1.msra.mxu0 0.0
    %681 = vmatprep.subr.mxu0 0.0
    %682 = vmatpush1.msra.mxu0 0.0
    %683 = vmatprep.subr.mxu0 0.0
    %684 = vmatpush1.msra.mxu0 0.0
    %685 = vmatprep.subr.mxu0 0.0
    %686 = vmatpush1.msra.mxu0 0.0
    %687 = vmatprep.subr.mxu0 0.0
    %688 = vmatpush1.msra.mxu0 0.0
    %689 = vmatprep.subr.mxu0 0.0
    %690 = vmatpush1.msra.mxu0 0.0
    %691 = vmatprep.subr.mxu0 0.0
    %692 = vmatpush1.msra.mxu0 0.0
    %693 = vmatprep.subr.mxu0 0.0
    %694 = vmatpush1.msra.mxu0 0.0
    %695 = vmatprep.subr.mxu0 0.0
    %696 = vmatpush1.msra.mxu0 0.0
    %697 = vmatprep.subr.mxu0 0.0
    %698 = vmatpush1.msra.mxu0 0.0
    %699 = vmatprep.subr.mxu0 0.0
    %700 = vmatpush1.msra.mxu0 0.0
    %701 = vmatprep.subr.mxu0 0.0
    %702 = vmatpush1.msra.mxu0 0.0
    %703 = vmatprep.subr.mxu0 0.0
    %704 = vmatpush1.msra.mxu0 0.0
    %705 = vmatprep.subr.mxu0 0.0
    %706 = vmatpush1.msra.mxu0 0.0
    %707 = vmatprep.subr.mxu0 0.0
    %708 = vmatpush1.msra.mxu0 0.0
    %709 = vmatprep.subr.mxu0 0.0
    %710 = vmatpush1.msra.mxu0 %v78
    %711 = vmatprep.subr.mxu0 0.0
    %712 = vmatpush2.msra.mxu0 0.0
    %713 = vmatprep.subr.mxu0 0.0
    %714 = vmatpush2.msra.mxu0 0.0
    %715 = vmatprep.subr.mxu0 0.0
    %716 = vmatpush2.msra.mxu0 0.0
    %717 = vmatprep.subr.mxu0 0.0
    %718 = vmatpush2.msra.mxu0 0.0
    %719 = vmatprep.subr.mxu0 0.0
    %720 = vmatpush2.msra.mxu0 0.0
    %721 = vmatprep.subr.mxu0 0.0
    %722 = vmatpush2.msra.mxu0 0.0
    %723 = vmatprep.subr.mxu0 0.0
    %724 = vmatpush2.msra.mxu0 0.0
    %725 = vmatprep.subr.mxu0 0.0
    %726 = vmatpush2.msra.mxu0 0.0
    %727 = vmatprep.subr.mxu0 0.0
    %728 = vmatpush2.msra.mxu0 0.0
    %729 = vmatprep.subr.mxu0 0.0
    %730 = vmatpush2.msra.mxu0 0.0
    %731 = vmatprep.subr.mxu0 0.0
    %732 = vmatpush2.msra.mxu0 0.0
    %733 = vmatprep.subr.mxu0 0.0
    %734 = vmatpush2.msra.mxu0 0.0
    %735 = vmatprep.subr.mxu0 0.0
    %736 = vmatpush2.msra.mxu0 0.0
    %737 = vmatprep.subr.mxu0 0.0
    %738 = vmatpush2.msra.mxu0 0.0
    %739 = vmatprep.subr.mxu0 0.0
    %740 = vmatpush2.msra.mxu0 0.0
    %741 = vmatprep.subr.mxu0 0.0
    %742 = vmatpush2.msra.mxu0 0.0
    %743 = vmatprep.mubr.f32.mxu0 0.0
    %744 = vmatmul.mubr.f32.gmra.mxu0 %v677
    %v745 = vpop.f32.mrf.mxu0
    %v746 = vadd.f32 0.0, %v745
    %v747 = vpop.f32.mrf.mxu0
    %748 = vdwg.mxu0
    %749 = vmatprep.subr.mxu0 0.0
    %750 = vmatpush1.msra.mxu0 0.0
    %751 = vmatprep.subr.mxu0 0.0
    %752 = vmatpush1.msra.mxu0 0.0
    %753 = vmatprep.subr.mxu0 0.0
    %754 = vmatpush1.msra.mxu0 0.0
    %755 = vmatprep.subr.mxu0 0.0
    %756 = vmatpush1.msra.mxu0 0.0
    %757 = vmatprep.subr.mxu0 0.0
    %758 = vmatpush1.msra.mxu0 0.0
    %759 = vmatprep.subr.mxu0 0.0
    %760 = vmatpush1.msra.mxu0 0.0
    %761 = vmatprep.subr.mxu0 0.0
    %762 = vmatpush1.msra.mxu0 0.0
    %763 = vmatprep.subr.mxu0 0.0
    %764 = vmatpush1.msra.mxu0 0.0
    %765 = vmatprep.subr.mxu0 0.0
    %766 = vmatpush1.msra.mxu0 0.0
    %767 = vmatprep.subr.mxu0 0.0
    %768 = vmatpush1.msra.mxu0 0.0
    %769 = vmatprep.subr.mxu0 0.0
    %770 = vmatpush1.msra.mxu0 0.0
    %771 = vmatprep.subr.mxu0 0.0
    %772 = vmatpush1.msra.mxu0 0.0
    %773 = vmatprep.subr.mxu0 0.0
    %774 = vmatpush1.msra.mxu0 0.0
    %775 = vmatprep.subr.mxu0 0.0
    %776 = vmatpush1.msra.mxu0 0.0
    %777 = vmatprep.subr.mxu0 0.0
    %778 = vmatpush1.msra.mxu0 0.0
    %779 = vmatprep.subr.mxu0 0.0
    %780 = vmatpush1.msra.mxu0 %v154
    %781 = vmatprep.subr.mxu0 0.0
    %782 = vmatpush2.msra.mxu0 0.0
    %783 = vmatprep.subr.mxu0 0.0
    %784 = vmatpush2.msra.mxu0 0.0
    %785 = vmatprep.subr.mxu0 0.0
    %786 = vmatpush2.msra.mxu0 0.0
    %787 = vmatprep.subr.mxu0 0.0
    %788 = vmatpush2.msra.mxu0 0.0
    %789 = vmatprep.subr.mxu0 0.0
    %790 = vmatpush2.msra.mxu0 0.0
    %791 = vmatprep.subr.mxu0 0.0
    %792 = vmatpush2.msra.mxu0 0.0
    %793 = vmatprep.subr.mxu0 0.0
    %794 = vmatpush2.msra.mxu0 0.0
    %795 = vmatprep.subr.mxu0 0.0
    %796 = vmatpush2.msra.mxu0 0.0
    %797 = vmatprep.subr.mxu0 0.0
    %798 = vmatpush2.msra.mxu0 0.0
    %799 = vmatprep.subr.mxu0 0.0
    %800 = vmatpush2.msra.mxu0 0.0
    %801 = vmatprep.subr.mxu0 0.0
    %802 = vmatpush2.msra.mxu0 0.0
    %803 = vmatprep.subr.mxu0 0.0
    %804 = vmatpush2.msra.mxu0 0.0
    %805 = vmatprep.subr.mxu0 0.0
    %806 = vmatpush2.msra.mxu0 0.0
    %807 = vmatprep.subr.mxu0 0.0
    %808 = vmatpush2.msra.mxu0 0.0
    %809 = vmatprep.subr.mxu0 0.0
    %810 = vmatpush2.msra.mxu0 0.0
    %811 = vmatprep.subr.mxu0 0.0
    %812 = vmatpush2.msra.mxu0 0.0
    %813 = vmatprep.mubr.f32.mxu0 0.0
    %814 = vmatmul.mubr.f32.gmra.mxu0 %v531
    %v815 = vpop.f32.mrf.mxu0
    %v816 = vadd.f32 %v746, %v815
    %v817 = vpop.f32.mrf.mxu0
    %818 = vdwg.mxu0
    %819 = vmatprep.subr.mxu0 0.0
    %820 = vmatpush1.msra.mxu0 0.0
    %821 = vmatprep.subr.mxu0 0.0
    %822 = vmatpush1.msra.mxu0 0.0
    %823 = vmatprep.subr.mxu0 0.0
    %824 = vmatpush1.msra.mxu0 0.0
    %825 = vmatprep.subr.mxu0 0.0
    %826 = vmatpush1.msra.mxu0 0.0
    %827 = vmatprep.subr.mxu0 0.0
    %828 = vmatpush1.msra.mxu0 0.0
    %829 = vmatprep.subr.mxu0 0.0
    %830 = vmatpush1.msra.mxu0 0.0
    %831 = vmatprep.subr.mxu0 0.0
    %832 = vmatpush1.msra.mxu0 0.0
    %833 = vmatprep.subr.mxu0 0.0
    %834 = vmatpush1.msra.mxu0 0.0
    %835 = vmatprep.subr.mxu0 0.0
    %836 = vmatpush1.msra.mxu0 0.0
    %837 = vmatprep.subr.mxu0 0.0
    %838 = vmatpush1.msra.mxu0 0.0
    %839 = vmatprep.subr.mxu0 0.0
    %840 = vmatpush1.msra.mxu0 0.0
    %841 = vmatprep.subr.mxu0 0.0
    %842 = vmatpush1.msra.mxu0 0.0
    %843 = vmatprep.subr.mxu0 0.0
    %844 = vmatpush1.msra.mxu0 0.0
    %845 = vmatprep.subr.mxu0 0.0
    %846 = vmatpush1.msra.mxu0 0.0
    %847 = vmatprep.subr.mxu0 0.0
    %848 = vmatpush1.msra.mxu0 0.0
    %849 = vmatprep.subr.mxu0 0.0
    %850 = vmatpush1.msra.mxu0 %v370
    %851 = vmatprep.subr.mxu0 0.0
    %852 = vmatpush2.msra.mxu0 0.0
    %853 = vmatprep.subr.mxu0 0.0
    %854 = vmatpush2.msra.mxu0 0.0
    %855 = vmatprep.subr.mxu0 0.0
    %856 = vmatpush2.msra.mxu0 0.0
    %857 = vmatprep.subr.mxu0 0.0
    %858 = vmatpush2.msra.mxu0 0.0
    %859 = vmatprep.subr.mxu0 0.0
    %860 = vmatpush2.msra.mxu0 0.0
    %861 = vmatprep.subr.mxu0 0.0
    %862 = vmatpush2.msra.mxu0 0.0
    %863 = vmatprep.subr.mxu0 0.0
    %864 = vmatpush2.msra.mxu0 0.0
    %865 = vmatprep.subr.mxu0 0.0
    %866 = vmatpush2.msra.mxu0 0.0
    %867 = vmatprep.subr.mxu0 0.0
    %868 = vmatpush2.msra.mxu0 0.0
    %869 = vmatprep.subr.mxu0 0.0
    %870 = vmatpush2.msra.mxu0 0.0
    %871 = vmatprep.subr.mxu0 0.0
    %872 = vmatpush2.msra.mxu0 0.0
    %873 = vmatprep.subr.mxu0 0.0
    %874 = vmatpush2.msra.mxu0 0.0
    %875 = vmatprep.subr.mxu0 0.0
    %876 = vmatpush2.msra.mxu0 0.0
    %877 = vmatprep.subr.mxu0 0.0
    %878 = vmatpush2.msra.mxu0 0.0
    %879 = vmatprep.subr.mxu0 0.0
    %880 = vmatpush2.msra.mxu0 0.0
    %881 = vmatprep.subr.mxu0 0.0
    %882 = vmatpush2.msra.mxu0 0.0
    %883 = vmatprep.mubr.f32.mxu0 0.0
    %884 = vmatmul.mubr.f32.gmra.mxu0 %v677
    %v885 = vpop.f32.mrf.mxu0
    %v886 = vadd.f32 0.0, %v885
    %v887 = vpop.f32.mrf.mxu0
    %888 = vdwg.mxu0
    %v889 = vadd.f32 %v673, %v886
    %v891 = vsel %vm47, %v72, 0
    %893 = vmatprep.subr.mxu0 0.0
    %894 = vmatpush1.msra.mxu0 0.0
    %895 = vmatprep.subr.mxu0 0.0
    %896 = vmatpush1.msra.mxu0 0.0
    %897 = vmatprep.subr.mxu0 0.0
    %898 = vmatpush1.msra.mxu0 0.0
    %899 = vmatprep.subr.mxu0 0.0
    %900 = vmatpush1.msra.mxu0 0.0
    %901 = vmatprep.subr.mxu0 0.0
    %902 = vmatpush1.msra.mxu0 0.0
    %903 = vmatprep.subr.mxu0 0.0
    %904 = vmatpush1.msra.mxu0 0.0
    %905 = vmatprep.subr.mxu0 0.0
    %906 = vmatpush1.msra.mxu0 0.0
    %907 = vmatprep.subr.mxu0 0.0
    %908 = vmatpush1.msra.mxu0 0.0
    %909 = vmatprep.subr.mxu0 0.0
    %910 = vmatpush1.msra.mxu0 0.0
    %911 = vmatprep.subr.mxu0 0.0
    %912 = vmatpush1.msra.mxu0 0.0
    %913 = vmatprep.subr.mxu0 0.0
    %914 = vmatpush1.msra.mxu0 0.0
    %915 = vmatprep.subr.mxu0 0.0
    %916 = vmatpush1.msra.mxu0 0.0
    %917 = vmatprep.subr.mxu0 0.0
    %918 = vmatpush1.msra.mxu0 0.0
    %919 = vmatprep.subr.mxu0 0.0
    %920 = vmatpush1.msra.mxu0 0.0
    %921 = vmatprep.subr.mxu0 0.0
    %922 = vmatpush1.msra.mxu0 0.0
    %923 = vmatprep.subr.mxu0 0.0
    %924 = vmatpush1.msra.mxu0 %v370
    %925 = vmatprep.subr.mxu0 0.0
    %926 = vmatpush2.msra.mxu0 0.0
    %927 = vmatprep.subr.mxu0 0.0
    %928 = vmatpush2.msra.mxu0 0.0
    %929 = vmatprep.subr.mxu0 0.0
    %930 = vmatpush2.msra.mxu0 0.0
    %931 = vmatprep.subr.mxu0 0.0
    %932 = vmatpush2.msra.mxu0 0.0
    %933 = vmatprep.subr.mxu0 0.0
    %934 = vmatpush2.msra.mxu0 0.0
    %935 = vmatprep.subr.mxu0 0.0
    %936 = vmatpush2.msra.mxu0 0.0
    %937 = vmatprep.subr.mxu0 0.0
    %938 = vmatpush2.msra.mxu0 0.0
    %939 = vmatprep.subr.mxu0 0.0
    %940 = vmatpush2.msra.mxu0 0.0
    %941 = vmatprep.subr.mxu0 0.0
    %942 = vmatpush2.msra.mxu0 0.0
    %943 = vmatprep.subr.mxu0 0.0
    %944 = vmatpush2.msra.mxu0 0.0
    %945 = vmatprep.subr.mxu0 0.0
    %946 = vmatpush2.msra.mxu0 0.0
    %947 = vmatprep.subr.mxu0 0.0
    %948 = vmatpush2.msra.mxu0 0.0
    %949 = vmatprep.subr.mxu0 0.0
    %950 = vmatpush2.msra.mxu0 0.0
    %951 = vmatprep.subr.mxu0 0.0
    %952 = vmatpush2.msra.mxu0 0.0
    %953 = vmatprep.subr.mxu0 0.0
    %954 = vmatpush2.msra.mxu0 0.0
    %955 = vmatprep.subr.mxu0 0.0
    %956 = vmatpush2.msra.mxu0 0.0
    %957 = vmatprep.mubr.f32.mxu0 0.0
    %958 = vmatmul.mubr.f32.gmra.mxu0 %v891
    %v959 = vpop.f32.mrf.mxu0
    %v960 = vadd.f32 0.0, %v959
    %v961 = vpop.f32.mrf.mxu0
    %962 = vdwg.mxu0
    %v963 = vadd.f32 %v816, %v960
    %v964 = vadd.f32 %v889, %v521
    %v965 = vmax.f32 %v964, 0.0
    %v966 = vadd.f32 %v963, %v521
    %v967 = vmax.f32 %v966, 0.0
    %v968 = vmax.f32 %v965, %v967
    %s969 = scalar_lea.vmem [#allocation3], 16
    %970 = vst.msk [vmem:[%s969 + $0x1] sm:$0xff] %vm528, %v968
    %v971 = vld [vmem:[%s2] sm:$0xff]
    %s972 = scalar_lea.vmem %s2, 8
    %v973 = vld [vmem:[%s972] sm:$0xff]
    %s974 = scalar_lea.vmem %s2, 16
    %v975 = vld [vmem:[%s974] sm:$0xff]
    %v976 = vld [vmem:[%s4] sm:$0x1]
    %v977 = vld [vmem:[#allocation3] ss:$2 sm:$0xf]
    %s978 = scalar_lea.vmem [#allocation3], 16
    %v979 = vld [vmem:[%s978] ss:$2 sm:$0xf]
    %s980 = scalar_lea.vmem [#allocation3], 1
    %v981 = vld [vmem:[%s980] ss:$2 sm:$0xf]
    %s982 = scalar_lea.vmem [#allocation3], 17
    %v983 = vld [vmem:[%s982] ss:$2 sm:$0xf]
    %s984 = scalar_lea.vmem [#allocation3], 2
    %v985 = vld [vmem:[%s984] ss:$2 sm:$0xf]
    %s986 = scalar_lea.vmem [#allocation3], 18
    %v987 = vld [vmem:[%s986] ss:$2 sm:$0xf]
    %s988 = scalar_lea.vmem [#allocation3], 3
    %v989 = vld [vmem:[%s988] ss:$2 sm:$0xf]
    %s990 = scalar_lea.vmem [#allocation3], 19
    %v991 = vld [vmem:[%s990] ss:$2 sm:$0xf]
    %v993 = vsel %vm528, %v981, 0
    %995 = vmatprep.subr.mxu0 0.0
    %996 = vmatpush1.msra.mxu0 0.0
    %997 = vmatprep.subr.mxu0 0.0
    %998 = vmatpush1.msra.mxu0 0.0
    %999 = vmatprep.subr.mxu0 0.0
    %1000 = vmatpush1.msra.mxu0 0.0
    %1001 = vmatprep.subr.mxu0 0.0
    %1002 = vmatpush1.msra.mxu0 0.0
    %1003 = vmatprep.subr.mxu0 0.0
    %1004 = vmatpush1.msra.mxu0 0.0
    %1005 = vmatprep.subr.mxu0 0.0
    %1006 = vmatpush1.msra.mxu0 0.0
    %1007 = vmatprep.subr.mxu0 0.0
    %1008 = vmatpush1.msra.mxu0 0.0
    %1009 = vmatprep.subr.mxu0 0.0
    %1010 = vmatpush1.msra.mxu0 0.0
    %1011 = vmatprep.subr.mxu0 0.0
    %1012 = vmatpush1.msra.mxu0 0.0
    %1013 = vmatprep.subr.mxu0 0.0
    %1014 = vmatpush1.msra.mxu0 0.0
    %1015 = vmatprep.subr.mxu0 0.0
    %1016 = vmatpush1.msra.mxu0 0.0
    %1017 = vmatprep.subr.mxu0 0.0
    %1018 = vmatpush1.msra.mxu0 0.0
    %1019 = vmatprep.subr.mxu0 0.0
    %1020 = vmatpush1.msra.mxu0 0.0
    %1021 = vmatprep.subr.mxu0 0.0
    %1022 = vmatpush1.msra.mxu0 0.0
    %1023 = vmatprep.subr.mxu0 0.0
    %1024 = vmatpush1.msra.mxu0 0.0
    %1025 = vmatprep.subr.mxu0 0.0
    %1026 = vmatpush1.msra.mxu0 %v973
    %1027 = vmatprep.subr.mxu0 0.0
    %1028 = vmatpush2.msra.mxu0 0.0
    %1029 = vmatprep.subr.mxu0 0.0
    %1030 = vmatpush2.msra.mxu0 0.0
    %1031 = vmatprep.subr.mxu0 0.0
    %1032 = vmatpush2.msra.mxu0 0.0
    %1033 = vmatprep.subr.mxu0 0.0
    %1034 = vmatpush2.msra.mxu0 0.0
    %1035 = vmatprep.subr.mxu0 0.0
    %1036 = vmatpush2.msra.mxu0 0.0
    %1037 = vmatprep.subr.mxu0 0.0
    %1038 = vmatpush2.msra.mxu0 0.0
    %1039 = vmatprep.subr.mxu0 0.0
    %1040 = vmatpush2.msra.mxu0 0.0
    %1041 = vmatprep.subr.mxu0 0.0
    %1042 = vmatpush2.msra.mxu0 0.0
    %1043 = vmatprep.subr.mxu0 0.0
    %1044 = vmatpush2.msra.mxu0 0.0
    %1045 = vmatprep.subr.mxu0 0.0
    %1046 = vmatpush2.msra.mxu0 0.0
    %1047 = vmatprep.subr.mxu0 0.0
    %1048 = vmatpush2.msra.mxu0 0.0
    %1049 = vmatprep.subr.mxu0 0.0
    %1050 = vmatpush2.msra.mxu0 0.0
    %1051 = vmatprep.subr.mxu0 0.0
    %1052 = vmatpush2.msra.mxu0 0.0
    %1053 = vmatprep.subr.mxu0 0.0
    %1054 = vmatpush2.msra.mxu0 0.0
    %1055 = vmatprep.subr.mxu0 0.0
    %1056 = vmatpush2.msra.mxu0 0.0
    %1057 = vmatprep.subr.mxu0 0.0
    %1058 = vmatpush2.msra.mxu0 0.0
    %1059 = vmatprep.mubr.f32.mxu0 0.0
    %1060 = vmatmul.mubr.f32.gmra.mxu0 %v993
    %v1061 = vpop.f32.mrf.mxu0
    %v1062 = vadd.f32 0.0, %v1061
    %v1063 = vpop.f32.mrf.mxu0
    %1064 = vdwg.mxu0
    %v1066 = vsel %vm528, %v977, 0
    %1068 = vmatprep.subr.mxu0 0.0
    %1069 = vmatpush1.msra.mxu0 0.0
    %1070 = vmatprep.subr.mxu0 0.0
    %1071 = vmatpush1.msra.mxu0 0.0
    %1072 = vmatprep.subr.mxu0 0.0
    %1073 = vmatpush1.msra.mxu0 0.0
    %1074 = vmatprep.subr.mxu0 0.0
    %1075 = vmatpush1.msra.mxu0 0.0
    %1076 = vmatprep.subr.mxu0 0.0
    %1077 = vmatpush1.msra.mxu0 0.0
    %1078 = vmatprep.subr.mxu0 0.0
    %1079 = vmatpush1.msra.mxu0 0.0
    %1080 = vmatprep.subr.mxu0 0.0
    %1081 = vmatpush1.msra.mxu0 0.0
    %1082 = vmatprep.subr.mxu0 0.0
    %1083 = vmatpush1.msra.mxu0 0.0
    %1084 = vmatprep.subr.mxu0 0.0
    %1085 = vmatpush1.msra.mxu0 0.0
    %1086 = vmatprep.subr.mxu0 0.0
    %1087 = vmatpush1.msra.mxu0 0.0
    %1088 = vmatprep.subr.mxu0 0.0
    %1089 = vmatpush1.msra.mxu0 0.0
    %1090 = vmatprep.subr.mxu0 0.0
    %1091 = vmatpush1.msra.mxu0 0.0
    %1092 = vmatprep.subr.mxu0 0.0
    %1093 = vmatpush1.msra.mxu0 0.0
    %1094 = vmatprep.subr.mxu0 0.0
    %1095 = vmatpush1.msra.mxu0 0.0
    %1096 = vmatprep.subr.mxu0 0.0
    %1097 = vmatpush1.msra.mxu0 0.0
    %1098 = vmatprep.subr.mxu0 0.0
    %1099 = vmatpush1.msra.mxu0 %v971
    %1100 = vmatprep.subr.mxu0 0.0
    %1101 = vmatpush2.msra.mxu0 0.0
    %1102 = vmatprep.subr.mxu0 0.0
    %1103 = vmatpush2.msra.mxu0 0.0
    %1104 = vmatprep.subr.mxu0 0.0
    %1105 = vmatpush2.msra.mxu0 0.0
    %1106 = vmatprep.subr.mxu0 0.0
    %1107 = vmatpush2.msra.mxu0 0.0
    %1108 = vmatprep.subr.mxu0 0.0
    %1109 = vmatpush2.msra.mxu0 0.0
    %1110 = vmatprep.subr.mxu0 0.0
    %1111 = vmatpush2.msra.mxu0 0.0
    %1112 = vmatprep.subr.mxu0 0.0
    %1113 = vmatpush2.msra.mxu0 0.0
    %1114 = vmatprep.subr.mxu0 0.0
    %1115 = vmatpush2.msra.mxu0 0.0
    %1116 = vmatprep.subr.mxu0 0.0
    %1117 = vmatpush2.msra.mxu0 0.0
    %1118 = vmatprep.subr.mxu0 0.0
    %1119 = vmatpush2.msra.mxu0 0.0
    %1120 = vmatprep.subr.mxu0 0.0
    %1121 = vmatpush2.msra.mxu0 0.0
    %1122 = vmatprep.subr.mxu0 0.0
    %1123 = vmatpush2.msra.mxu0 0.0
    %1124 = vmatprep.subr.mxu0 0.0
    %1125 = vmatpush2.msra.mxu0 0.0
    %1126 = vmatprep.subr.mxu0 0.0
    %1127 = vmatpush2.msra.mxu0 0.0
    %1128 = vmatprep.subr.mxu0 0.0
    %1129 = vmatpush2.msra.mxu0 0.0
    %1130 = vmatprep.subr.mxu0 0.0
    %1131 = vmatpush2.msra.mxu0 0.0
    %1132 = vmatprep.mubr.f32.mxu0 0.0
    %1133 = vmatmul.mubr.f32.gmra.mxu0 %v1066
    %v1134 = vpop.f32.mrf.mxu0
    %v1135 = vadd.f32 %v1062, %v1134
    %v1136 = vpop.f32.mrf.mxu0
    %1137 = vdwg.mxu0
    %v1139 = vsel %vm528, %v985, 0
    %1141 = vmatprep.subr.mxu0 0.0
    %1142 = vmatpush1.msra.mxu0 0.0
    %1143 = vmatprep.subr.mxu0 0.0
    %1144 = vmatpush1.msra.mxu0 0.0
    %1145 = vmatprep.subr.mxu0 0.0
    %1146 = vmatpush1.msra.mxu0 0.0
    %1147 = vmatprep.subr.mxu0 0.0
    %1148 = vmatpush1.msra.mxu0 0.0
    %1149 = vmatprep.subr.mxu0 0.0
    %1150 = vmatpush1.msra.mxu0 0.0
    %1151 = vmatprep.subr.mxu0 0.0
    %1152 = vmatpush1.msra.mxu0 0.0
    %1153 = vmatprep.subr.mxu0 0.0
    %1154 = vmatpush1.msra.mxu0 0.0
    %1155 = vmatprep.subr.mxu0 0.0
    %1156 = vmatpush1.msra.mxu0 0.0
    %1157 = vmatprep.subr.mxu0 0.0
    %1158 = vmatpush1.msra.mxu0 0.0
    %1159 = vmatprep.subr.mxu0 0.0
    %1160 = vmatpush1.msra.mxu0 0.0
    %1161 = vmatprep.subr.mxu0 0.0
    %1162 = vmatpush1.msra.mxu0 0.0
    %1163 = vmatprep.subr.mxu0 0.0
    %1164 = vmatpush1.msra.mxu0 0.0
    %1165 = vmatprep.subr.mxu0 0.0
    %1166 = vmatpush1.msra.mxu0 0.0
    %1167 = vmatprep.subr.mxu0 0.0
    %1168 = vmatpush1.msra.mxu0 0.0
    %1169 = vmatprep.subr.mxu0 0.0
    %1170 = vmatpush1.msra.mxu0 0.0
    %1171 = vmatprep.subr.mxu0 0.0
    %1172 = vmatpush1.msra.mxu0 %v973
    %1173 = vmatprep.subr.mxu0 0.0
    %1174 = vmatpush2.msra.mxu0 0.0
    %1175 = vmatprep.subr.mxu0 0.0
    %1176 = vmatpush2.msra.mxu0 0.0
    %1177 = vmatprep.subr.mxu0 0.0
    %1178 = vmatpush2.msra.mxu0 0.0
    %1179 = vmatprep.subr.mxu0 0.0
    %1180 = vmatpush2.msra.mxu0 0.0
    %1181 = vmatprep.subr.mxu0 0.0
    %1182 = vmatpush2.msra.mxu0 0.0
    %1183 = vmatprep.subr.mxu0 0.0
    %1184 = vmatpush2.msra.mxu0 0.0
    %1185 = vmatprep.subr.mxu0 0.0
    %1186 = vmatpush2.msra.mxu0 0.0
    %1187 = vmatprep.subr.mxu0 0.0
    %1188 = vmatpush2.msra.mxu0 0.0
    %1189 = vmatprep.subr.mxu0 0.0
    %1190 = vmatpush2.msra.mxu0 0.0
    %1191 = vmatprep.subr.mxu0 0.0
    %1192 = vmatpush2.msra.mxu0 0.0
    %1193 = vmatprep.subr.mxu0 0.0
    %1194 = vmatpush2.msra.mxu0 0.0
    %1195 = vmatprep.subr.mxu0 0.0
    %1196 = vmatpush2.msra.mxu0 0.0
    %1197 = vmatprep.subr.mxu0 0.0
    %1198 = vmatpush2.msra.mxu0 0.0
    %1199 = vmatprep.subr.mxu0 0.0
    %1200 = vmatpush2.msra.mxu0 0.0
    %1201 = vmatprep.subr.mxu0 0.0
    %1202 = vmatpush2.msra.mxu0 0.0
    %1203 = vmatprep.subr.mxu0 0.0
    %1204 = vmatpush2.msra.mxu0 0.0
    %1205 = vmatprep.mubr.f32.mxu0 0.0
    %1206 = vmatmul.mubr.f32.gmra.mxu0 %v1139
    %v1207 = vpop.f32.mrf.mxu0
    %v1208 = vadd.f32 0.0, %v1207
    %v1209 = vpop.f32.mrf.mxu0
    %1210 = vdwg.mxu0
    %1211 = vmatprep.subr.mxu0 0.0
    %1212 = vmatpush1.msra.mxu0 0.0
    %1213 = vmatprep.subr.mxu0 0.0
    %1214 = vmatpush1.msra.mxu0 0.0
    %1215 = vmatprep.subr.mxu0 0.0
    %1216 = vmatpush1.msra.mxu0 0.0
    %1217 = vmatprep.subr.mxu0 0.0
    %1218 = vmatpush1.msra.mxu0 0.0
    %1219 = vmatprep.subr.mxu0 0.0
    %1220 = vmatpush1.msra.mxu0 0.0
    %1221 = vmatprep.subr.mxu0 0.0
    %1222 = vmatpush1.msra.mxu0 0.0
    %1223 = vmatprep.subr.mxu0 0.0
    %1224 = vmatpush1.msra.mxu0 0.0
    %1225 = vmatprep.subr.mxu0 0.0
    %1226 = vmatpush1.msra.mxu0 0.0
    %1227 = vmatprep.subr.mxu0 0.0
    %1228 = vmatpush1.msra.mxu0 0.0
    %1229 = vmatprep.subr.mxu0 0.0
    %1230 = vmatpush1.msra.mxu0 0.0
    %1231 = vmatprep.subr.mxu0 0.0
    %1232 = vmatpush1.msra.mxu0 0.0
    %1233 = vmatprep.subr.mxu0 0.0
    %1234 = vmatpush1.msra.mxu0 0.0
    %1235 = vmatprep.subr.mxu0 0.0
    %1236 = vmatpush1.msra.mxu0 0.0
    %1237 = vmatprep.subr.mxu0 0.0
    %1238 = vmatpush1.msra.mxu0 0.0
    %1239 = vmatprep.subr.mxu0 0.0
    %1240 = vmatpush1.msra.mxu0 0.0
    %1241 = vmatprep.subr.mxu0 0.0
    %1242 = vmatpush1.msra.mxu0 %v971
    %1243 = vmatprep.subr.mxu0 0.0
    %1244 = vmatpush2.msra.mxu0 0.0
    %1245 = vmatprep.subr.mxu0 0.0
    %1246 = vmatpush2.msra.mxu0 0.0
    %1247 = vmatprep.subr.mxu0 0.0
    %1248 = vmatpush2.msra.mxu0 0.0
    %1249 = vmatprep.subr.mxu0 0.0
    %1250 = vmatpush2.msra.mxu0 0.0
    %1251 = vmatprep.subr.mxu0 0.0
    %1252 = vmatpush2.msra.mxu0 0.0
    %1253 = vmatprep.subr.mxu0 0.0
    %1254 = vmatpush2.msra.mxu0 0.0
    %1255 = vmatprep.subr.mxu0 0.0
    %1256 = vmatpush2.msra.mxu0 0.0
    %1257 = vmatprep.subr.mxu0 0.0
    %1258 = vmatpush2.msra.mxu0 0.0
    %1259 = vmatprep.subr.mxu0 0.0
    %1260 = vmatpush2.msra.mxu0 0.0
    %1261 = vmatprep.subr.mxu0 0.0
    %1262 = vmatpush2.msra.mxu0 0.0
    %1263 = vmatprep.subr.mxu0 0.0
    %1264 = vmatpush2.msra.mxu0 0.0
    %1265 = vmatprep.subr.mxu0 0.0
    %1266 = vmatpush2.msra.mxu0 0.0
    %1267 = vmatprep.subr.mxu0 0.0
    %1268 = vmatpush2.msra.mxu0 0.0
    %1269 = vmatprep.subr.mxu0 0.0
    %1270 = vmatpush2.msra.mxu0 0.0
    %1271 = vmatprep.subr.mxu0 0.0
    %1272 = vmatpush2.msra.mxu0 0.0
    %1273 = vmatprep.subr.mxu0 0.0
    %1274 = vmatpush2.msra.mxu0 0.0
    %1275 = vmatprep.mubr.f32.mxu0 0.0
    %1276 = vmatmul.mubr.f32.gmra.mxu0 %v993
    %v1277 = vpop.f32.mrf.mxu0
    %v1278 = vadd.f32 %v1208, %v1277
    %v1279 = vpop.f32.mrf.mxu0
    %1280 = vdwg.mxu0
    %1281 = vmatprep.subr.mxu0 0.0
    %1282 = vmatpush1.msra.mxu0 0.0
    %1283 = vmatprep.subr.mxu0 0.0
    %1284 = vmatpush1.msra.mxu0 0.0
    %1285 = vmatprep.subr.mxu0 0.0
    %1286 = vmatpush1.msra.mxu0 0.0
    %1287 = vmatprep.subr.mxu0 0.0
    %1288 = vmatpush1.msra.mxu0 0.0
    %1289 = vmatprep.subr.mxu0 0.0
    %1290 = vmatpush1.msra.mxu0 0.0
    %1291 = vmatprep.subr.mxu0 0.0
    %1292 = vmatpush1.msra.mxu0 0.0
    %1293 = vmatprep.subr.mxu0 0.0
    %1294 = vmatpush1.msra.mxu0 0.0
    %1295 = vmatprep.subr.mxu0 0.0
    %1296 = vmatpush1.msra.mxu0 0.0
    %1297 = vmatprep.subr.mxu0 0.0
    %1298 = vmatpush1.msra.mxu0 0.0
    %1299 = vmatprep.subr.mxu0 0.0
    %1300 = vmatpush1.msra.mxu0 0.0
    %1301 = vmatprep.subr.mxu0 0.0
    %1302 = vmatpush1.msra.mxu0 0.0
    %1303 = vmatprep.subr.mxu0 0.0
    %1304 = vmatpush1.msra.mxu0 0.0
    %1305 = vmatprep.subr.mxu0 0.0
    %1306 = vmatpush1.msra.mxu0 0.0
    %1307 = vmatprep.subr.mxu0 0.0
    %1308 = vmatpush1.msra.mxu0 0.0
    %1309 = vmatprep.subr.mxu0 0.0
    %1310 = vmatpush1.msra.mxu0 0.0
    %1311 = vmatprep.subr.mxu0 0.0
    %1312 = vmatpush1.msra.mxu0 %v975
    %1313 = vmatprep.subr.mxu0 0.0
    %1314 = vmatpush2.msra.mxu0 0.0
    %1315 = vmatprep.subr.mxu0 0.0
    %1316 = vmatpush2.msra.mxu0 0.0
    %1317 = vmatprep.subr.mxu0 0.0
    %1318 = vmatpush2.msra.mxu0 0.0
    %1319 = vmatprep.subr.mxu0 0.0
    %1320 = vmatpush2.msra.mxu0 0.0
    %1321 = vmatprep.subr.mxu0 0.0
    %1322 = vmatpush2.msra.mxu0 0.0
    %1323 = vmatprep.subr.mxu0 0.0
    %1324 = vmatpush2.msra.mxu0 0.0
    %1325 = vmatprep.subr.mxu0 0.0
    %1326 = vmatpush2.msra.mxu0 0.0
    %1327 = vmatprep.subr.mxu0 0.0
    %1328 = vmatpush2.msra.mxu0 0.0
    %1329 = vmatprep.subr.mxu0 0.0
    %1330 = vmatpush2.msra.mxu0 0.0
    %1331 = vmatprep.subr.mxu0 0.0
    %1332 = vmatpush2.msra.mxu0 0.0
    %1333 = vmatprep.subr.mxu0 0.0
    %1334 = vmatpush2.msra.mxu0 0.0
    %1335 = vmatprep.subr.mxu0 0.0
    %1336 = vmatpush2.msra.mxu0 0.0
    %1337 = vmatprep.subr.mxu0 0.0
    %1338 = vmatpush2.msra.mxu0 0.0
    %1339 = vmatprep.subr.mxu0 0.0
    %1340 = vmatpush2.msra.mxu0 0.0
    %1341 = vmatprep.subr.mxu0 0.0
    %1342 = vmatpush2.msra.mxu0 0.0
    %1343 = vmatprep.subr.mxu0 0.0
    %1344 = vmatpush2.msra.mxu0 0.0
    %1345 = vmatprep.mubr.f32.mxu0 0.0
    %1346 = vmatmul.mubr.f32.gmra.mxu0 %v1139
    %v1347 = vpop.f32.mrf.mxu0
    %v1348 = vadd.f32 0.0, %v1347
    %v1349 = vpop.f32.mrf.mxu0
    %1350 = vdwg.mxu0
    %v1351 = vadd.f32 %v1135, %v1348
    %v1353 = vsel %vm528, %v989, 0
    %1355 = vmatprep.subr.mxu0 0.0
    %1356 = vmatpush1.msra.mxu0 0.0
    %1357 = vmatprep.subr.mxu0 0.0
    %1358 = vmatpush1.msra.mxu0 0.0
    %1359 = vmatprep.subr.mxu0 0.0
    %1360 = vmatpush1.msra.mxu0 0.0
    %1361 = vmatprep.subr.mxu0 0.0
    %1362 = vmatpush1.msra.mxu0 0.0
    %1363 = vmatprep.subr.mxu0 0.0
    %1364 = vmatpush1.msra.mxu0 0.0
    %1365 = vmatprep.subr.mxu0 0.0
    %1366 = vmatpush1.msra.mxu0 0.0
    %1367 = vmatprep.subr.mxu0 0.0
    %1368 = vmatpush1.msra.mxu0 0.0
    %1369 = vmatprep.subr.mxu0 0.0
    %1370 = vmatpush1.msra.mxu0 0.0
    %1371 = vmatprep.subr.mxu0 0.0
    %1372 = vmatpush1.msra.mxu0 0.0
    %1373 = vmatprep.subr.mxu0 0.0
    %1374 = vmatpush1.msra.mxu0 0.0
    %1375 = vmatprep.subr.mxu0 0.0
    %1376 = vmatpush1.msra.mxu0 0.0
    %1377 = vmatprep.subr.mxu0 0.0
    %1378 = vmatpush1.msra.mxu0 0.0
    %1379 = vmatprep.subr.mxu0 0.0
    %1380 = vmatpush1.msra.mxu0 0.0
    %1381 = vmatprep.subr.mxu0 0.0
    %1382 = vmatpush1.msra.mxu0 0.0
    %1383 = vmatprep.subr.mxu0 0.0
    %1384 = vmatpush1.msra.mxu0 0.0
    %1385 = vmatprep.subr.mxu0 0.0
    %1386 = vmatpush1.msra.mxu0 %v975
    %1387 = vmatprep.subr.mxu0 0.0
    %1388 = vmatpush2.msra.mxu0 0.0
    %1389 = vmatprep.subr.mxu0 0.0
    %1390 = vmatpush2.msra.mxu0 0.0
    %1391 = vmatprep.subr.mxu0 0.0
    %1392 = vmatpush2.msra.mxu0 0.0
    %1393 = vmatprep.subr.mxu0 0.0
    %1394 = vmatpush2.msra.mxu0 0.0
    %1395 = vmatprep.subr.mxu0 0.0
    %1396 = vmatpush2.msra.mxu0 0.0
    %1397 = vmatprep.subr.mxu0 0.0
    %1398 = vmatpush2.msra.mxu0 0.0
    %1399 = vmatprep.subr.mxu0 0.0
    %1400 = vmatpush2.msra.mxu0 0.0
    %1401 = vmatprep.subr.mxu0 0.0
    %1402 = vmatpush2.msra.mxu0 0.0
    %1403 = vmatprep.subr.mxu0 0.0
    %1404 = vmatpush2.msra.mxu0 0.0
    %1405 = vmatprep.subr.mxu0 0.0
    %1406 = vmatpush2.msra.mxu0 0.0
    %1407 = vmatprep.subr.mxu0 0.0
    %1408 = vmatpush2.msra.mxu0 0.0
    %1409 = vmatprep.subr.mxu0 0.0
    %1410 = vmatpush2.msra.mxu0 0.0
    %1411 = vmatprep.subr.mxu0 0.0
    %1412 = vmatpush2.msra.mxu0 0.0
    %1413 = vmatprep.subr.mxu0 0.0
    %1414 = vmatpush2.msra.mxu0 0.0
    %1415 = vmatprep.subr.mxu0 0.0
    %1416 = vmatpush2.msra.mxu0 0.0
    %1417 = vmatprep.subr.mxu0 0.0
    %1418 = vmatpush2.msra.mxu0 0.0
    %1419 = vmatprep.mubr.f32.mxu0 0.0
    %1420 = vmatmul.mubr.f32.gmra.mxu0 %v1353
    %v1421 = vpop.f32.mrf.mxu0
    %v1422 = vadd.f32 0.0, %v1421
    %v1423 = vpop.f32.mrf.mxu0
    %1424 = vdwg.mxu0
    %v1425 = vadd.f32 %v1278, %v1422
    %v1427 = vlaneseq
    %v1428 = vshrl.u32 %v1427, 7
    %v1429 = vsub.s32 0, %v1428
    %v1430 = vrot.slane %v976, %v1429
    %v1432 = vadd.f32 %v1351, %v1430
    %v1433 = vmax.f32 %v1432, 0.0
    %v1434 = vadd.f32 %v1425, %v1430
    %v1435 = vmax.f32 %v1434, 0.0
    %v1436 = vmax.f32 %v1433, %v1435
    %vm1437 = vcmask 60416
    %1438 = vst.msk [vmem:[#allocation4] sm:$0xf] %vm1437, %v1436
    %v1440 = vsel %vm528, %v983, 0
    %1442 = vmatprep.subr.mxu0 0.0
    %1443 = vmatpush1.msra.mxu0 0.0
    %1444 = vmatprep.subr.mxu0 0.0
    %1445 = vmatpush1.msra.mxu0 0.0
    %1446 = vmatprep.subr.mxu0 0.0
    %1447 = vmatpush1.msra.mxu0 0.0
    %1448 = vmatprep.subr.mxu0 0.0
    %1449 = vmatpush1.msra.mxu0 0.0
    %1450 = vmatprep.subr.mxu0 0.0
    %1451 = vmatpush1.msra.mxu0 0.0
    %1452 = vmatprep.subr.mxu0 0.0
    %1453 = vmatpush1.msra.mxu0 0.0
    %1454 = vmatprep.subr.mxu0 0.0
    %1455 = vmatpush1.msra.mxu0 0.0
    %1456 = vmatprep.subr.mxu0 0.0
    %1457 = vmatpush1.msra.mxu0 0.0
    %1458 = vmatprep.subr.mxu0 0.0
    %1459 = vmatpush1.msra.mxu0 0.0
    %1460 = vmatprep.subr.mxu0 0.0
    %1461 = vmatpush1.msra.mxu0 0.0
    %1462 = vmatprep.subr.mxu0 0.0
    %1463 = vmatpush1.msra.mxu0 0.0
    %1464 = vmatprep.subr.mxu0 0.0
    %1465 = vmatpush1.msra.mxu0 0.0
    %1466 = vmatprep.subr.mxu0 0.0
    %1467 = vmatpush1.msra.mxu0 0.0
    %1468 = vmatprep.subr.mxu0 0.0
    %1469 = vmatpush1.msra.mxu0 0.0
    %1470 = vmatprep.subr.mxu0 0.0
    %1471 = vmatpush1.msra.mxu0 0.0
    %1472 = vmatprep.subr.mxu0 0.0
    %1473 = vmatpush1.msra.mxu0 %v973
    %1474 = vmatprep.subr.mxu0 0.0
    %1475 = vmatpush2.msra.mxu0 0.0
    %1476 = vmatprep.subr.mxu0 0.0
    %1477 = vmatpush2.msra.mxu0 0.0
    %1478 = vmatprep.subr.mxu0 0.0
    %1479 = vmatpush2.msra.mxu0 0.0
    %1480 = vmatprep.subr.mxu0 0.0
    %1481 = vmatpush2.msra.mxu0 0.0
    %1482 = vmatprep.subr.mxu0 0.0
    %1483 = vmatpush2.msra.mxu0 0.0
    %1484 = vmatprep.subr.mxu0 0.0
    %1485 = vmatpush2.msra.mxu0 0.0
    %1486 = vmatprep.subr.mxu0 0.0
    %1487 = vmatpush2.msra.mxu0 0.0
    %1488 = vmatprep.subr.mxu0 0.0
    %1489 = vmatpush2.msra.mxu0 0.0
    %1490 = vmatprep.subr.mxu0 0.0
    %1491 = vmatpush2.msra.mxu0 0.0
    %1492 = vmatprep.subr.mxu0 0.0
    %1493 = vmatpush2.msra.mxu0 0.0
    %1494 = vmatprep.subr.mxu0 0.0
    %1495 = vmatpush2.msra.mxu0 0.0
    %1496 = vmatprep.subr.mxu0 0.0
    %1497 = vmatpush2.msra.mxu0 0.0
    %1498 = vmatprep.subr.mxu0 0.0
    %1499 = vmatpush2.msra.mxu0 0.0
    %1500 = vmatprep.subr.mxu0 0.0
    %1501 = vmatpush2.msra.mxu0 0.0
    %1502 = vmatprep.subr.mxu0 0.0
    %1503 = vmatpush2.msra.mxu0 0.0
    %1504 = vmatprep.subr.mxu0 0.0
    %1505 = vmatpush2.msra.mxu0 0.0
    %1506 = vmatprep.mubr.f32.mxu0 0.0
    %1507 = vmatmul.mubr.f32.gmra.mxu0 %v1440
    %v1508 = vpop.f32.mrf.mxu0
    %v1509 = vadd.f32 0.0, %v1508
    %v1510 = vpop.f32.mrf.mxu0
    %1511 = vdwg.mxu0
    %v1513 = vsel %vm528, %v979, 0
    %1515 = vmatprep.subr.mxu0 0.0
    %1516 = vmatpush1.msra.mxu0 0.0
    %1517 = vmatprep.subr.mxu0 0.0
    %1518 = vmatpush1.msra.mxu0 0.0
    %1519 = vmatprep.subr.mxu0 0.0
    %1520 = vmatpush1.msra.mxu0 0.0
    %1521 = vmatprep.subr.mxu0 0.0
    %1522 = vmatpush1.msra.mxu0 0.0
    %1523 = vmatprep.subr.mxu0 0.0
    %1524 = vmatpush1.msra.mxu0 0.0
    %1525 = vmatprep.subr.mxu0 0.0
    %1526 = vmatpush1.msra.mxu0 0.0
    %1527 = vmatprep.subr.mxu0 0.0
    %1528 = vmatpush1.msra.mxu0 0.0
    %1529 = vmatprep.subr.mxu0 0.0
    %1530 = vmatpush1.msra.mxu0 0.0
    %1531 = vmatprep.subr.mxu0 0.0
    %1532 = vmatpush1.msra.mxu0 0.0
    %1533 = vmatprep.subr.mxu0 0.0
    %1534 = vmatpush1.msra.mxu0 0.0
    %1535 = vmatprep.subr.mxu0 0.0
    %1536 = vmatpush1.msra.mxu0 0.0
    %1537 = vmatprep.subr.mxu0 0.0
    %1538 = vmatpush1.msra.mxu0 0.0
    %1539 = vmatprep.subr.mxu0 0.0
    %1540 = vmatpush1.msra.mxu0 0.0
    %1541 = vmatprep.subr.mxu0 0.0
    %1542 = vmatpush1.msra.mxu0 0.0
    %1543 = vmatprep.subr.mxu0 0.0
    %1544 = vmatpush1.msra.mxu0 0.0
    %1545 = vmatprep.subr.mxu0 0.0
    %1546 = vmatpush1.msra.mxu0 %v971
    %1547 = vmatprep.subr.mxu0 0.0
    %1548 = vmatpush2.msra.mxu0 0.0
    %1549 = vmatprep.subr.mxu0 0.0
    %1550 = vmatpush2.msra.mxu0 0.0
    %1551 = vmatprep.subr.mxu0 0.0
    %1552 = vmatpush2.msra.mxu0 0.0
    %1553 = vmatprep.subr.mxu0 0.0
    %1554 = vmatpush2.msra.mxu0 0.0
    %1555 = vmatprep.subr.mxu0 0.0
    %1556 = vmatpush2.msra.mxu0 0.0
    %1557 = vmatprep.subr.mxu0 0.0
    %1558 = vmatpush2.msra.mxu0 0.0
    %1559 = vmatprep.subr.mxu0 0.0
    %1560 = vmatpush2.msra.mxu0 0.0
    %1561 = vmatprep.subr.mxu0 0.0
    %1562 = vmatpush2.msra.mxu0 0.0
    %1563 = vmatprep.subr.mxu0 0.0
    %1564 = vmatpush2.msra.mxu0 0.0
    %1565 = vmatprep.subr.mxu0 0.0
    %1566 = vmatpush2.msra.mxu0 0.0
    %1567 = vmatprep.subr.mxu0 0.0
    %1568 = vmatpush2.msra.mxu0 0.0
    %1569 = vmatprep.subr.mxu0 0.0
    %1570 = vmatpush2.msra.mxu0 0.0
    %1571 = vmatprep.subr.mxu0 0.0
    %1572 = vmatpush2.msra.mxu0 0.0
    %1573 = vmatprep.subr.mxu0 0.0
    %1574 = vmatpush2.msra.mxu0 0.0
    %1575 = vmatprep.subr.mxu0 0.0
    %1576 = vmatpush2.msra.mxu0 0.0
    %1577 = vmatprep.subr.mxu0 0.0
    %1578 = vmatpush2.msra.mxu0 0.0
    %1579 = vmatprep.mubr.f32.mxu0 0.0
    %1580 = vmatmul.mubr.f32.gmra.mxu0 %v1513
    %v1581 = vpop.f32.mrf.mxu0
    %v1582 = vadd.f32 %v1509, %v1581
    %v1583 = vpop.f32.mrf.mxu0
    %1584 = vdwg.mxu0
    %v1586 = vsel %vm528, %v987, 0
    %1588 = vmatprep.subr.mxu0 0.0
    %1589 = vmatpush1.msra.mxu0 0.0
    %1590 = vmatprep.subr.mxu0 0.0
    %1591 = vmatpush1.msra.mxu0 0.0
    %1592 = vmatprep.subr.mxu0 0.0
    %1593 = vmatpush1.msra.mxu0 0.0
    %1594 = vmatprep.subr.mxu0 0.0
    %1595 = vmatpush1.msra.mxu0 0.0
    %1596 = vmatprep.subr.mxu0 0.0
    %1597 = vmatpush1.msra.mxu0 0.0
    %1598 = vmatprep.subr.mxu0 0.0
    %1599 = vmatpush1.msra.mxu0 0.0
    %1600 = vmatprep.subr.mxu0 0.0
    %1601 = vmatpush1.msra.mxu0 0.0
    %1602 = vmatprep.subr.mxu0 0.0
    %1603 = vmatpush1.msra.mxu0 0.0
    %1604 = vmatprep.subr.mxu0 0.0
    %1605 = vmatpush1.msra.mxu0 0.0
    %1606 = vmatprep.subr.mxu0 0.0
    %1607 = vmatpush1.msra.mxu0 0.0
    %1608 = vmatprep.subr.mxu0 0.0
    %1609 = vmatpush1.msra.mxu0 0.0
    %1610 = vmatprep.subr.mxu0 0.0
    %1611 = vmatpush1.msra.mxu0 0.0
    %1612 = vmatprep.subr.mxu0 0.0
    %1613 = vmatpush1.msra.mxu0 0.0
    %1614 = vmatprep.subr.mxu0 0.0
    %1615 = vmatpush1.msra.mxu0 0.0
    %1616 = vmatprep.subr.mxu0 0.0
    %1617 = vmatpush1.msra.mxu0 0.0
    %1618 = vmatprep.subr.mxu0 0.0
    %1619 = vmatpush1.msra.mxu0 %v973
    %1620 = vmatprep.subr.mxu0 0.0
    %1621 = vmatpush2.msra.mxu0 0.0
    %1622 = vmatprep.subr.mxu0 0.0
    %1623 = vmatpush2.msra.mxu0 0.0
    %1624 = vmatprep.subr.mxu0 0.0
    %1625 = vmatpush2.msra.mxu0 0.0
    %1626 = vmatprep.subr.mxu0 0.0
    %1627 = vmatpush2.msra.mxu0 0.0
    %1628 = vmatprep.subr.mxu0 0.0
    %1629 = vmatpush2.msra.mxu0 0.0
    %1630 = vmatprep.subr.mxu0 0.0
    %1631 = vmatpush2.msra.mxu0 0.0
    %1632 = vmatprep.subr.mxu0 0.0
    %1633 = vmatpush2.msra.mxu0 0.0
    %1634 = vmatprep.subr.mxu0 0.0
    %1635 = vmatpush2.msra.mxu0 0.0
    %1636 = vmatprep.subr.mxu0 0.0
    %1637 = vmatpush2.msra.mxu0 0.0
    %1638 = vmatprep.subr.mxu0 0.0
    %1639 = vmatpush2.msra.mxu0 0.0
    %1640 = vmatprep.subr.mxu0 0.0
    %1641 = vmatpush2.msra.mxu0 0.0
    %1642 = vmatprep.subr.mxu0 0.0
    %1643 = vmatpush2.msra.mxu0 0.0
    %1644 = vmatprep.subr.mxu0 0.0
    %1645 = vmatpush2.msra.mxu0 0.0
    %1646 = vmatprep.subr.mxu0 0.0
    %1647 = vmatpush2.msra.mxu0 0.0
    %1648 = vmatprep.subr.mxu0 0.0
    %1649 = vmatpush2.msra.mxu0 0.0
    %1650 = vmatprep.subr.mxu0 0.0
    %1651 = vmatpush2.msra.mxu0 0.0
    %1652 = vmatprep.mubr.f32.mxu0 0.0
    %1653 = vmatmul.mubr.f32.gmra.mxu0 %v1586
    %v1654 = vpop.f32.mrf.mxu0
    %v1655 = vadd.f32 0.0, %v1654
    %v1656 = vpop.f32.mrf.mxu0
    %1657 = vdwg.mxu0
    %1658 = vmatprep.subr.mxu0 0.0
    %1659 = vmatpush1.msra.mxu0 0.0
    %1660 = vmatprep.subr.mxu0 0.0
    %1661 = vmatpush1.msra.mxu0 0.0
    %1662 = vmatprep.subr.mxu0 0.0
    %1663 = vmatpush1.msra.mxu0 0.0
    %1664 = vmatprep.subr.mxu0 0.0
    %1665 = vmatpush1.msra.mxu0 0.0
    %1666 = vmatprep.subr.mxu0 0.0
    %1667 = vmatpush1.msra.mxu0 0.0
    %1668 = vmatprep.subr.mxu0 0.0
    %1669 = vmatpush1.msra.mxu0 0.0
    %1670 = vmatprep.subr.mxu0 0.0
    %1671 = vmatpush1.msra.mxu0 0.0
    %1672 = vmatprep.subr.mxu0 0.0
    %1673 = vmatpush1.msra.mxu0 0.0
    %1674 = vmatprep.subr.mxu0 0.0
    %1675 = vmatpush1.msra.mxu0 0.0
    %1676 = vmatprep.subr.mxu0 0.0
    %1677 = vmatpush1.msra.mxu0 0.0
    %1678 = vmatprep.subr.mxu0 0.0
    %1679 = vmatpush1.msra.mxu0 0.0
    %1680 = vmatprep.subr.mxu0 0.0
    %1681 = vmatpush1.msra.mxu0 0.0
    %1682 = vmatprep.subr.mxu0 0.0
    %1683 = vmatpush1.msra.mxu0 0.0
    %1684 = vmatprep.subr.mxu0 0.0
    %1685 = vmatpush1.msra.mxu0 0.0
    %1686 = vmatprep.subr.mxu0 0.0
    %1687 = vmatpush1.msra.mxu0 0.0
    %1688 = vmatprep.subr.mxu0 0.0
    %1689 = vmatpush1.msra.mxu0 %v971
    %1690 = vmatprep.subr.mxu0 0.0
    %1691 = vmatpush2.msra.mxu0 0.0
    %1692 = vmatprep.subr.mxu0 0.0
    %1693 = vmatpush2.msra.mxu0 0.0
    %1694 = vmatprep.subr.mxu0 0.0
    %1695 = vmatpush2.msra.mxu0 0.0
    %1696 = vmatprep.subr.mxu0 0.0
    %1697 = vmatpush2.msra.mxu0 0.0
    %1698 = vmatprep.subr.mxu0 0.0
    %1699 = vmatpush2.msra.mxu0 0.0
    %1700 = vmatprep.subr.mxu0 0.0
    %1701 = vmatpush2.msra.mxu0 0.0
    %1702 = vmatprep.subr.mxu0 0.0
    %1703 = vmatpush2.msra.mxu0 0.0
    %1704 = vmatprep.subr.mxu0 0.0
    %1705 = vmatpush2.msra.mxu0 0.0
    %1706 = vmatprep.subr.mxu0 0.0
    %1707 = vmatpush2.msra.mxu0 0.0
    %1708 = vmatprep.subr.mxu0 0.0
    %1709 = vmatpush2.msra.mxu0 0.0
    %1710 = vmatprep.subr.mxu0 0.0
    %1711 = vmatpush2.msra.mxu0 0.0
    %1712 = vmatprep.subr.mxu0 0.0
    %1713 = vmatpush2.msra.mxu0 0.0
    %1714 = vmatprep.subr.mxu0 0.0
    %1715 = vmatpush2.msra.mxu0 0.0
    %1716 = vmatprep.subr.mxu0 0.0
    %1717 = vmatpush2.msra.mxu0 0.0
    %1718 = vmatprep.subr.mxu0 0.0
    %1719 = vmatpush2.msra.mxu0 0.0
    %1720 = vmatprep.subr.mxu0 0.0
    %1721 = vmatpush2.msra.mxu0 0.0
    %1722 = vmatprep.mubr.f32.mxu0 0.0
    %1723 = vmatmul.mubr.f32.gmra.mxu0 %v1440
    %v1724 = vpop.f32.mrf.mxu0
    %v1725 = vadd.f32 %v1655, %v1724
    %v1726 = vpop.f32.mrf.mxu0
    %1727 = vdwg.mxu0
    %1728 = vmatprep.subr.mxu0 0.0
    %1729 = vmatpush1.msra.mxu0 0.0
    %1730 = vmatprep.subr.mxu0 0.0
    %1731 = vmatpush1.msra.mxu0 0.0
    %1732 = vmatprep.subr.mxu0 0.0
    %1733 = vmatpush1.msra.mxu0 0.0
    %1734 = vmatprep.subr.mxu0 0.0
    %1735 = vmatpush1.msra.mxu0 0.0
    %1736 = vmatprep.subr.mxu0 0.0
    %1737 = vmatpush1.msra.mxu0 0.0
    %1738 = vmatprep.subr.mxu0 0.0
    %1739 = vmatpush1.msra.mxu0 0.0
    %1740 = vmatprep.subr.mxu0 0.0
    %1741 = vmatpush1.msra.mxu0 0.0
    %1742 = vmatprep.subr.mxu0 0.0
    %1743 = vmatpush1.msra.mxu0 0.0
    %1744 = vmatprep.subr.mxu0 0.0
    %1745 = vmatpush1.msra.mxu0 0.0
    %1746 = vmatprep.subr.mxu0 0.0
    %1747 = vmatpush1.msra.mxu0 0.0
    %1748 = vmatprep.subr.mxu0 0.0
    %1749 = vmatpush1.msra.mxu0 0.0
    %1750 = vmatprep.subr.mxu0 0.0
    %1751 = vmatpush1.msra.mxu0 0.0
    %1752 = vmatprep.subr.mxu0 0.0
    %1753 = vmatpush1.msra.mxu0 0.0
    %1754 = vmatprep.subr.mxu0 0.0
    %1755 = vmatpush1.msra.mxu0 0.0
    %1756 = vmatprep.subr.mxu0 0.0
    %1757 = vmatpush1.msra.mxu0 0.0
    %1758 = vmatprep.subr.mxu0 0.0
    %1759 = vmatpush1.msra.mxu0 %v975
    %1760 = vmatprep.subr.mxu0 0.0
    %1761 = vmatpush2.msra.mxu0 0.0
    %1762 = vmatprep.subr.mxu0 0.0
    %1763 = vmatpush2.msra.mxu0 0.0
    %1764 = vmatprep.subr.mxu0 0.0
    %1765 = vmatpush2.msra.mxu0 0.0
    %1766 = vmatprep.subr.mxu0 0.0
    %1767 = vmatpush2.msra.mxu0 0.0
    %1768 = vmatprep.subr.mxu0 0.0
    %1769 = vmatpush2.msra.mxu0 0.0
    %1770 = vmatprep.subr.mxu0 0.0
    %1771 = vmatpush2.msra.mxu0 0.0
    %1772 = vmatprep.subr.mxu0 0.0
    %1773 = vmatpush2.msra.mxu0 0.0
    %1774 = vmatprep.subr.mxu0 0.0
    %1775 = vmatpush2.msra.mxu0 0.0
    %1776 = vmatprep.subr.mxu0 0.0
    %1777 = vmatpush2.msra.mxu0 0.0
    %1778 = vmatprep.subr.mxu0 0.0
    %1779 = vmatpush2.msra.mxu0 0.0
    %1780 = vmatprep.subr.mxu0 0.0
    %1781 = vmatpush2.msra.mxu0 0.0
    %1782 = vmatprep.subr.mxu0 0.0
    %1783 = vmatpush2.msra.mxu0 0.0
    %1784 = vmatprep.subr.mxu0 0.0
    %1785 = vmatpush2.msra.mxu0 0.0
    %1786 = vmatprep.subr.mxu0 0.0
    %1787 = vmatpush2.msra.mxu0 0.0
    %1788 = vmatprep.subr.mxu0 0.0
    %1789 = vmatpush2.msra.mxu0 0.0
    %1790 = vmatprep.subr.mxu0 0.0
    %1791 = vmatpush2.msra.mxu0 0.0
    %1792 = vmatprep.mubr.f32.mxu0 0.0
    %1793 = vmatmul.mubr.f32.gmra.mxu0 %v1586
    %v1794 = vpop.f32.mrf.mxu0
    %v1795 = vadd.f32 0.0, %v1794
    %v1796 = vpop.f32.mrf.mxu0
    %1797 = vdwg.mxu0
    %v1798 = vadd.f32 %v1582, %v1795
    %v1800 = vsel %vm528, %v991, 0
    %1802 = vmatprep.subr.mxu0 0.0
    %1803 = vmatpush1.msra.mxu0 0.0
    %1804 = vmatprep.subr.mxu0 0.0
    %1805 = vmatpush1.msra.mxu0 0.0
    %1806 = vmatprep.subr.mxu0 0.0
    %1807 = vmatpush1.msra.mxu0 0.0
    %1808 = vmatprep.subr.mxu0 0.0
    %1809 = vmatpush1.msra.mxu0 0.0
    %1810 = vmatprep.subr.mxu0 0.0
    %1811 = vmatpush1.msra.mxu0 0.0
    %1812 = vmatprep.subr.mxu0 0.0
    %1813 = vmatpush1.msra.mxu0 0.0
    %1814 = vmatprep.subr.mxu0 0.0
    %1815 = vmatpush1.msra.mxu0 0.0
    %1816 = vmatprep.subr.mxu0 0.0
    %1817 = vmatpush1.msra.mxu0 0.0
    %1818 = vmatprep.subr.mxu0 0.0
    %1819 = vmatpush1.msra.mxu0 0.0
    %1820 = vmatprep.subr.mxu0 0.0
    %1821 = vmatpush1.msra.mxu0 0.0
    %1822 = vmatprep.subr.mxu0 0.0
    %1823 = vmatpush1.msra.mxu0 0.0
    %1824 = vmatprep.subr.mxu0 0.0
    %1825 = vmatpush1.msra.mxu0 0.0
    %1826 = vmatprep.subr.mxu0 0.0
    %1827 = vmatpush1.msra.mxu0 0.0
    %1828 = vmatprep.subr.mxu0 0.0
    %1829 = vmatpush1.msra.mxu0 0.0
    %1830 = vmatprep.subr.mxu0 0.0
    %1831 = vmatpush1.msra.mxu0 0.0
    %1832 = vmatprep.subr.mxu0 0.0
    %1833 = vmatpush1.msra.mxu0 %v975
    %1834 = vmatprep.subr.mxu0 0.0
    %1835 = vmatpush2.msra.mxu0 0.0
    %1836 = vmatprep.subr.mxu0 0.0
    %1837 = vmatpush2.msra.mxu0 0.0
    %1838 = vmatprep.subr.mxu0 0.0
    %1839 = vmatpush2.msra.mxu0 0.0
    %1840 = vmatprep.subr.mxu0 0.0
    %1841 = vmatpush2.msra.mxu0 0.0
    %1842 = vmatprep.subr.mxu0 0.0
    %1843 = vmatpush2.msra.mxu0 0.0
    %1844 = vmatprep.subr.mxu0 0.0
    %1845 = vmatpush2.msra.mxu0 0.0
    %1846 = vmatprep.subr.mxu0 0.0
    %1847 = vmatpush2.msra.mxu0 0.0
    %1848 = vmatprep.subr.mxu0 0.0
    %1849 = vmatpush2.msra.mxu0 0.0
    %1850 = vmatprep.subr.mxu0 0.0
    %1851 = vmatpush2.msra.mxu0 0.0
    %1852 = vmatprep.subr.mxu0 0.0
    %1853 = vmatpush2.msra.mxu0 0.0
    %1854 = vmatprep.subr.mxu0 0.0
    %1855 = vmatpush2.msra.mxu0 0.0
    %1856 = vmatprep.subr.mxu0 0.0
    %1857 = vmatpush2.msra.mxu0 0.0
    %1858 = vmatprep.subr.mxu0 0.0
    %1859 = vmatpush2.msra.mxu0 0.0
    %1860 = vmatprep.subr.mxu0 0.0
    %1861 = vmatpush2.msra.mxu0 0.0
    %1862 = vmatprep.subr.mxu0 0.0
    %1863 = vmatpush2.msra.mxu0 0.0
    %1864 = vmatprep.subr.mxu0 0.0
    %1865 = vmatpush2.msra.mxu0 0.0
    %1866 = vmatprep.mubr.f32.mxu0 0.0
    %1867 = vmatmul.mubr.f32.gmra.mxu0 %v1800
    %v1868 = vpop.f32.mrf.mxu0
    %v1869 = vadd.f32 0.0, %v1868
    %v1870 = vpop.f32.mrf.mxu0
    %1871 = vdwg.mxu0
    %v1872 = vadd.f32 %v1725, %v1869
    %v1873 = vadd.f32 %v1798, %v1430
    %v1874 = vmax.f32 %v1873, 0.0
    %v1875 = vadd.f32 %v1872, %v1430
    %v1876 = vmax.f32 %v1875, 0.0
    %v1877 = vmax.f32 %v1874, %v1876
    %s1878 = scalar_lea.vmem [#allocation4], 4
    %1879 = vst.msk [vmem:[%s1878] sm:$0xf] %vm1437, %v1877
    %v1880 = vld [vmem:[#allocation4] sm:$0xf]
    %v1881 = vld [vmem:[#allocation4 + $0x4] sm:$0xf]
    %v1882 = vld [vmem:[%s5] sm:$0xff]
    %s1883 = scalar_lea.vmem %s5, 8
    %v1884 = vld [vmem:[%s1883] sm:$0xff]
    %v1887 = vrot.slane %v1880, 1
    %vm1888 = vcmask 1041409
    %v1889 = vsel %vm1888, %v1881, %v1887
    %v1890 = vsel %vm528, %v1889, 0
    %1892 = vmatprep.subr.mxu0 0.0
    %1893 = vmatpush1.msra.mxu0 0.0
    %1894 = vmatprep.subr.mxu0 0.0
    %1895 = vmatpush1.msra.mxu0 0.0
    %1896 = vmatprep.subr.mxu0 0.0
    %1897 = vmatpush1.msra.mxu0 0.0
    %1898 = vmatprep.subr.mxu0 0.0
    %1899 = vmatpush1.msra.mxu0 0.0
    %1900 = vmatprep.subr.mxu0 0.0
    %1901 = vmatpush1.msra.mxu0 0.0
    %1902 = vmatprep.subr.mxu0 0.0
    %1903 = vmatpush1.msra.mxu0 0.0
    %1904 = vmatprep.subr.mxu0 0.0
    %1905 = vmatpush1.msra.mxu0 0.0
    %1906 = vmatprep.subr.mxu0 0.0
    %1907 = vmatpush1.msra.mxu0 0.0
    %1908 = vmatprep.subr.mxu0 0.0
    %1909 = vmatpush1.msra.mxu0 0.0
    %1910 = vmatprep.subr.mxu0 0.0
    %1911 = vmatpush1.msra.mxu0 0.0
    %1912 = vmatprep.subr.mxu0 0.0
    %1913 = vmatpush1.msra.mxu0 0.0
    %1914 = vmatprep.subr.mxu0 0.0
    %1915 = vmatpush1.msra.mxu0 0.0
    %1916 = vmatprep.subr.mxu0 0.0
    %1917 = vmatpush1.msra.mxu0 0.0
    %1918 = vmatprep.subr.mxu0 0.0
    %1919 = vmatpush1.msra.mxu0 0.0
    %1920 = vmatprep.subr.mxu0 0.0
    %1921 = vmatpush1.msra.mxu0 0.0
    %1922 = vmatprep.subr.mxu0 0.0
    %1923 = vmatpush1.msra.mxu0 %v1884
    %1924 = vmatprep.subr.mxu0 0.0
    %1925 = vmatpush2.msra.mxu0 0.0
    %1926 = vmatprep.subr.mxu0 0.0
    %1927 = vmatpush2.msra.mxu0 0.0
    %1928 = vmatprep.subr.mxu0 0.0
    %1929 = vmatpush2.msra.mxu0 0.0
    %1930 = vmatprep.subr.mxu0 0.0
    %1931 = vmatpush2.msra.mxu0 0.0
    %1932 = vmatprep.subr.mxu0 0.0
    %1933 = vmatpush2.msra.mxu0 0.0
    %1934 = vmatprep.subr.mxu0 0.0
    %1935 = vmatpush2.msra.mxu0 0.0
    %1936 = vmatprep.subr.mxu0 0.0
    %1937 = vmatpush2.msra.mxu0 0.0
    %1938 = vmatprep.subr.mxu0 0.0
    %1939 = vmatpush2.msra.mxu0 0.0
    %1940 = vmatprep.subr.mxu0 0.0
    %1941 = vmatpush2.msra.mxu0 0.0
    %1942 = vmatprep.subr.mxu0 0.0
    %1943 = vmatpush2.msra.mxu0 0.0
    %1944 = vmatprep.subr.mxu0 0.0
    %1945 = vmatpush2.msra.mxu0 0.0
    %1946 = vmatprep.subr.mxu0 0.0
    %1947 = vmatpush2.msra.mxu0 0.0
    %1948 = vmatprep.subr.mxu0 0.0
    %1949 = vmatpush2.msra.mxu0 0.0
    %1950 = vmatprep.subr.mxu0 0.0
    %1951 = vmatpush2.msra.mxu0 0.0
    %1952 = vmatprep.subr.mxu0 0.0
    %1953 = vmatpush2.msra.mxu0 0.0
    %1954 = vmatprep.subr.mxu0 0.0
    %1955 = vmatpush2.msra.mxu0 0.0
    %1956 = vmatprep.mubr.f32.mxu0 0.0
    %1957 = vmatmul.mubr.f32.gmra.mxu0 %v1890
    %v1958 = vpop.f32.mrf.mxu0
    %v1959 = vadd.f32 0.0, %v1958
    %v1960 = vpop.f32.mrf.mxu0
    %1961 = vdwg.mxu0
    %v1962 = vrot.slane %v1881, 7
    %v1963 = vsel %vm1888, %v1962, %v1880
    %v1964 = vsel %vm528, %v1963, 0
    %1966 = vmatprep.subr.mxu0 0.0
    %1967 = vmatpush1.msra.mxu0 0.0
    %1968 = vmatprep.subr.mxu0 0.0
    %1969 = vmatpush1.msra.mxu0 0.0
    %1970 = vmatprep.subr.mxu0 0.0
    %1971 = vmatpush1.msra.mxu0 0.0
    %1972 = vmatprep.subr.mxu0 0.0
    %1973 = vmatpush1.msra.mxu0 0.0
    %1974 = vmatprep.subr.mxu0 0.0
    %1975 = vmatpush1.msra.mxu0 0.0
    %1976 = vmatprep.subr.mxu0 0.0
    %1977 = vmatpush1.msra.mxu0 0.0
    %1978 = vmatprep.subr.mxu0 0.0
    %1979 = vmatpush1.msra.mxu0 0.0
    %1980 = vmatprep.subr.mxu0 0.0
    %1981 = vmatpush1.msra.mxu0 0.0
    %1982 = vmatprep.subr.mxu0 0.0
    %1983 = vmatpush1.msra.mxu0 0.0
    %1984 = vmatprep.subr.mxu0 0.0
    %1985 = vmatpush1.msra.mxu0 0.0
    %1986 = vmatprep.subr.mxu0 0.0
    %1987 = vmatpush1.msra.mxu0 0.0
    %1988 = vmatprep.subr.mxu0 0.0
    %1989 = vmatpush1.msra.mxu0 0.0
    %1990 = vmatprep.subr.mxu0 0.0
    %1991 = vmatpush1.msra.mxu0 0.0
    %1992 = vmatprep.subr.mxu0 0.0
    %1993 = vmatpush1.msra.mxu0 0.0
    %1994 = vmatprep.subr.mxu0 0.0
    %1995 = vmatpush1.msra.mxu0 0.0
    %1996 = vmatprep.subr.mxu0 0.0
    %1997 = vmatpush1.msra.mxu0 %v1882
    %1998 = vmatprep.subr.mxu0 0.0
    %1999 = vmatpush2.msra.mxu0 0.0
    %2000 = vmatprep.subr.mxu0 0.0
    %2001 = vmatpush2.msra.mxu0 0.0
    %2002 = vmatprep.subr.mxu0 0.0
    %2003 = vmatpush2.msra.mxu0 0.0
    %2004 = vmatprep.subr.mxu0 0.0
    %2005 = vmatpush2.msra.mxu0 0.0
    %2006 = vmatprep.subr.mxu0 0.0
    %2007 = vmatpush2.msra.mxu0 0.0
    %2008 = vmatprep.subr.mxu0 0.0
    %2009 = vmatpush2.msra.mxu0 0.0
    %2010 = vmatprep.subr.mxu0 0.0
    %2011 = vmatpush2.msra.mxu0 0.0
    %2012 = vmatprep.subr.mxu0 0.0
    %2013 = vmatpush2.msra.mxu0 0.0
    %2014 = vmatprep.subr.mxu0 0.0
    %2015 = vmatpush2.msra.mxu0 0.0
    %2016 = vmatprep.subr.mxu0 0.0
    %2017 = vmatpush2.msra.mxu0 0.0
    %2018 = vmatprep.subr.mxu0 0.0
    %2019 = vmatpush2.msra.mxu0 0.0
    %2020 = vmatprep.subr.mxu0 0.0
    %2021 = vmatpush2.msra.mxu0 0.0
    %2022 = vmatprep.subr.mxu0 0.0
    %2023 = vmatpush2.msra.mxu0 0.0
    %2024 = vmatprep.subr.mxu0 0.0
    %2025 = vmatpush2.msra.mxu0 0.0
    %2026 = vmatprep.subr.mxu0 0.0
    %2027 = vmatpush2.msra.mxu0 0.0
    %2028 = vmatprep.subr.mxu0 0.0
    %2029 = vmatpush2.msra.mxu0 0.0
    %2030 = vmatprep.mubr.f32.mxu0 0.0
    %2031 = vmatmul.mubr.f32.gmra.mxu0 %v1964
    %v2032 = vpop.f32.mrf.mxu0
    %v2033 = vadd.f32 %v1959, %v2032
    %v2034 = vpop.f32.mrf.mxu0
    %2035 = vdwg.mxu0
    %s2036 = scalar_lea.vmem %s5, 16
    %v2037 = vld [vmem:[%s2036] sm:$0xff]
    %v2038 = vrot.slane %v1880, 2
    %v2039 = vrot.slane %v1881, 1
    %v2040 = vsel %vm1888, %v2039, %v2038
    %v2041 = vsel %vm528, %v2040, 0
    %2043 = vmatprep.subr.mxu0 0.0
    %2044 = vmatpush1.msra.mxu0 0.0
    %2045 = vmatprep.subr.mxu0 0.0
    %2046 = vmatpush1.msra.mxu0 0.0
    %2047 = vmatprep.subr.mxu0 0.0
    %2048 = vmatpush1.msra.mxu0 0.0
    %2049 = vmatprep.subr.mxu0 0.0
    %2050 = vmatpush1.msra.mxu0 0.0
    %2051 = vmatprep.subr.mxu0 0.0
    %2052 = vmatpush1.msra.mxu0 0.0
    %2053 = vmatprep.subr.mxu0 0.0
    %2054 = vmatpush1.msra.mxu0 0.0
    %2055 = vmatprep.subr.mxu0 0.0
    %2056 = vmatpush1.msra.mxu0 0.0
    %2057 = vmatprep.subr.mxu0 0.0
    %2058 = vmatpush1.msra.mxu0 0.0
    %2059 = vmatprep.subr.mxu0 0.0
    %2060 = vmatpush1.msra.mxu0 0.0
    %2061 = vmatprep.subr.mxu0 0.0
    %2062 = vmatpush1.msra.mxu0 0.0
    %2063 = vmatprep.subr.mxu0 0.0
    %2064 = vmatpush1.msra.mxu0 0.0
    %2065 = vmatprep.subr.mxu0 0.0
    %2066 = vmatpush1.msra.mxu0 0.0
    %2067 = vmatprep.subr.mxu0 0.0
    %2068 = vmatpush1.msra.mxu0 0.0
    %2069 = vmatprep.subr.mxu0 0.0
    %2070 = vmatpush1.msra.mxu0 0.0
    %2071 = vmatprep.subr.mxu0 0.0
    %2072 = vmatpush1.msra.mxu0 0.0
    %2073 = vmatprep.subr.mxu0 0.0
    %2074 = vmatpush1.msra.mxu0 %v2037
    %2075 = vmatprep.subr.mxu0 0.0
    %2076 = vmatpush2.msra.mxu0 0.0
    %2077 = vmatprep.subr.mxu0 0.0
    %2078 = vmatpush2.msra.mxu0 0.0
    %2079 = vmatprep.subr.mxu0 0.0
    %2080 = vmatpush2.msra.mxu0 0.0
    %2081 = vmatprep.subr.mxu0 0.0
    %2082 = vmatpush2.msra.mxu0 0.0
    %2083 = vmatprep.subr.mxu0 0.0
    %2084 = vmatpush2.msra.mxu0 0.0
    %2085 = vmatprep.subr.mxu0 0.0
    %2086 = vmatpush2.msra.mxu0 0.0
    %2087 = vmatprep.subr.mxu0 0.0
    %2088 = vmatpush2.msra.mxu0 0.0
    %2089 = vmatprep.subr.mxu0 0.0
    %2090 = vmatpush2.msra.mxu0 0.0
    %2091 = vmatprep.subr.mxu0 0.0
    %2092 = vmatpush2.msra.mxu0 0.0
    %2093 = vmatprep.subr.mxu0 0.0
    %2094 = vmatpush2.msra.mxu0 0.0
    %2095 = vmatprep.subr.mxu0 0.0
    %2096 = vmatpush2.msra.mxu0 0.0
    %2097 = vmatprep.subr.mxu0 0.0
    %2098 = vmatpush2.msra.mxu0 0.0
    %2099 = vmatprep.subr.mxu0 0.0
    %2100 = vmatpush2.msra.mxu0 0.0
    %2101 = vmatprep.subr.mxu0 0.0
    %2102 = vmatpush2.msra.mxu0 0.0
    %2103 = vmatprep.subr.mxu0 0.0
    %2104 = vmatpush2.msra.mxu0 0.0
    %2105 = vmatprep.subr.mxu0 0.0
    %2106 = vmatpush2.msra.mxu0 0.0
    %2107 = vmatprep.mubr.f32.mxu0 0.0
    %2108 = vmatmul.mubr.f32.gmra.mxu0 %v2041
    %v2109 = vpop.f32.mrf.mxu0
    %v2110 = vadd.f32 0.0, %v2109
    %v2111 = vpop.f32.mrf.mxu0
    %2112 = vdwg.mxu0
    %v2113 = vadd.f32 %v2033, %v2110
    %s2114 = scalar_lea.vmem %s5, 24
    %v2115 = vld [vmem:[%s2114] sm:$0xff]
    %v2116 = vrot.slane %v1880, 3
    %v2117 = vrot.slane %v1881, 2
    %v2118 = vsel %vm1888, %v2117, %v2116
    %v2119 = vsel %vm528, %v2118, 0
    %2121 = vmatprep.subr.mxu0 0.0
    %2122 = vmatpush1.msra.mxu0 0.0
    %2123 = vmatprep.subr.mxu0 0.0
    %2124 = vmatpush1.msra.mxu0 0.0
    %2125 = vmatprep.subr.mxu0 0.0
    %2126 = vmatpush1.msra.mxu0 0.0
    %2127 = vmatprep.subr.mxu0 0.0
    %2128 = vmatpush1.msra.mxu0 0.0
    %2129 = vmatprep.subr.mxu0 0.0
    %2130 = vmatpush1.msra.mxu0 0.0
    %2131 = vmatprep.subr.mxu0 0.0
    %2132 = vmatpush1.msra.mxu0 0.0
    %2133 = vmatprep.subr.mxu0 0.0
    %2134 = vmatpush1.msra.mxu0 0.0
    %2135 = vmatprep.subr.mxu0 0.0
    %2136 = vmatpush1.msra.mxu0 0.0
    %2137 = vmatprep.subr.mxu0 0.0
    %2138 = vmatpush1.msra.mxu0 0.0
    %2139 = vmatprep.subr.mxu0 0.0
    %2140 = vmatpush1.msra.mxu0 0.0
    %2141 = vmatprep.subr.mxu0 0.0
    %2142 = vmatpush1.msra.mxu0 0.0
    %2143 = vmatprep.subr.mxu0 0.0
    %2144 = vmatpush1.msra.mxu0 0.0
    %2145 = vmatprep.subr.mxu0 0.0
    %2146 = vmatpush1.msra.mxu0 0.0
    %2147 = vmatprep.subr.mxu0 0.0
    %2148 = vmatpush1.msra.mxu0 0.0
    %2149 = vmatprep.subr.mxu0 0.0
    %2150 = vmatpush1.msra.mxu0 0.0
    %2151 = vmatprep.subr.mxu0 0.0
    %2152 = vmatpush1.msra.mxu0 %v2115
    %2153 = vmatprep.subr.mxu0 0.0
    %2154 = vmatpush2.msra.mxu0 0.0
    %2155 = vmatprep.subr.mxu0 0.0
    %2156 = vmatpush2.msra.mxu0 0.0
    %2157 = vmatprep.subr.mxu0 0.0
    %2158 = vmatpush2.msra.mxu0 0.0
    %2159 = vmatprep.subr.mxu0 0.0
    %2160 = vmatpush2.msra.mxu0 0.0
    %2161 = vmatprep.subr.mxu0 0.0
    %2162 = vmatpush2.msra.mxu0 0.0
    %2163 = vmatprep.subr.mxu0 0.0
    %2164 = vmatpush2.msra.mxu0 0.0
    %2165 = vmatprep.subr.mxu0 0.0
    %2166 = vmatpush2.msra.mxu0 0.0
    %2167 = vmatprep.subr.mxu0 0.0
    %2168 = vmatpush2.msra.mxu0 0.0
    %2169 = vmatprep.subr.mxu0 0.0
    %2170 = vmatpush2.msra.mxu0 0.0
    %2171 = vmatprep.subr.mxu0 0.0
    %2172 = vmatpush2.msra.mxu0 0.0
    %2173 = vmatprep.subr.mxu0 0.0
    %2174 = vmatpush2.msra.mxu0 0.0
    %2175 = vmatprep.subr.mxu0 0.0
    %2176 = vmatpush2.msra.mxu0 0.0
    %2177 = vmatprep.subr.mxu0 0.0
    %2178 = vmatpush2.msra.mxu0 0.0
    %2179 = vmatprep.subr.mxu0 0.0
    %2180 = vmatpush2.msra.mxu0 0.0
    %2181 = vmatprep.subr.mxu0 0.0
    %2182 = vmatpush2.msra.mxu0 0.0
    %2183 = vmatprep.subr.mxu0 0.0
    %2184 = vmatpush2.msra.mxu0 0.0
    %2185 = vmatprep.mubr.f32.mxu0 0.0
    %2186 = vmatmul.mubr.f32.gmra.mxu0 %v2119
    %v2187 = vpop.f32.mrf.mxu0
    %v2188 = vadd.f32 0.0, %v2187
    %v2189 = vpop.f32.mrf.mxu0
    %2190 = vdwg.mxu0
    %v2191 = vadd.f32 %v2113, %v2188
    %v2192 = vld [vmem:[%s6] sm:$0x1]
    %v2194 = vlaneseq
    %v2195 = vshrl.u32 %v2194, 7
    %v2196 = vsub.s32 0, %v2195
    %v2197 = vrot.slane %v2192, %v2196
    %v2199 = vadd.f32 %v2191, %v2197
    %v2200 = vmax.f32 %v2199, 0.0
    %v2201 = vld [vmem:[%s7] sm:$0xff]
    %v2202 = vld [vmem:[%s7 + $0x8] sm:$0xff]
    %v2203 = vld [vmem:[%s7 + $0x10] sm:$0xff]
    %v2204 = vld [vmem:[%s7 + $0x18] sm:$0xff]
    %v2205 = vld [vmem:[%s7 + $0x20] sm:$0xff]
    %v2206 = vld [vmem:[%s7 + $0x28] sm:$0xff]
    %v2207 = vld [vmem:[%s7 + $0x30] sm:$0xff]
    %v2208 = vld [vmem:[%s7 + $0x38] sm:$0xff]
    %v2209 = vld [vmem:[%s7 + $0x40] sm:$0xff]
    %v2210 = vld [vmem:[%s7 + $0x48] sm:$0xff]
    %v2211 = vld [vmem:[%s7 + $0x50] sm:$0xff]
    %v2212 = vld [vmem:[%s7 + $0x58] sm:$0xff]
    %v2213 = vld [vmem:[%s7 + $0x60] sm:$0xff]
    %v2214 = vld [vmem:[%s7 + $0x68] sm:$0xff]
    %v2215 = vld [vmem:[%s7 + $0x70] sm:$0xff]
    %v2216 = vld [vmem:[%s7 + $0x78] sm:$0xff]
    %v2217 = vld [vmem:[%s8] sm:$0x1]
    %v2219 = vlaneseq
    %v2220 = vshrl.u32 %v2219, 7
    %v2221 = vsub.s32 0, %v2220
    %v2222 = vrot.slane %v2217, %v2221
    %2224 = vmatprep.subr.mxu0 0.0
    %2225 = vmatpush1.msra.mxu0 %v2216
    %2226 = vmatprep.subr.mxu0 0.0
    %2227 = vmatpush1.msra.mxu0 %v2215
    %2228 = vmatprep.subr.mxu0 0.0
    %2229 = vmatpush1.msra.mxu0 %v2214
    %2230 = vmatprep.subr.mxu0 0.0
    %2231 = vmatpush1.msra.mxu0 %v2213
    %2232 = vmatprep.subr.mxu0 0.0
    %2233 = vmatpush1.msra.mxu0 %v2212
    %2234 = vmatprep.subr.mxu0 0.0
    %2235 = vmatpush1.msra.mxu0 %v2211
    %2236 = vmatprep.subr.mxu0 0.0
    %2237 = vmatpush1.msra.mxu0 %v2210
    %2238 = vmatprep.subr.mxu0 0.0
    %2239 = vmatpush1.msra.mxu0 %v2209
    %2240 = vmatprep.subr.mxu0 0.0
    %2241 = vmatpush1.msra.mxu0 %v2208
    %2242 = vmatprep.subr.mxu0 0.0
    %2243 = vmatpush1.msra.mxu0 %v2207
    %2244 = vmatprep.subr.mxu0 0.0
    %2245 = vmatpush1.msra.mxu0 %v2206
    %2246 = vmatprep.subr.mxu0 0.0
    %2247 = vmatpush1.msra.mxu0 %v2205
    %2248 = vmatprep.subr.mxu0 0.0
    %2249 = vmatpush1.msra.mxu0 %v2204
    %2250 = vmatprep.subr.mxu0 0.0
    %2251 = vmatpush1.msra.mxu0 %v2203
    %2252 = vmatprep.subr.mxu0 0.0
    %2253 = vmatpush1.msra.mxu0 %v2202
    %2254 = vmatprep.subr.mxu0 0.0
    %2255 = vmatpush1.msra.mxu0 %v2201
    %2256 = vmatprep.subr.mxu0 0.0
    %2257 = vmatpush2.msra.mxu0 0.0
    %2258 = vmatprep.subr.mxu0 0.0
    %2259 = vmatpush2.msra.mxu0 0.0
    %2260 = vmatprep.subr.mxu0 0.0
    %2261 = vmatpush2.msra.mxu0 0.0
    %2262 = vmatprep.subr.mxu0 0.0
    %2263 = vmatpush2.msra.mxu0 0.0
    %2264 = vmatprep.subr.mxu0 0.0
    %2265 = vmatpush2.msra.mxu0 0.0
    %2266 = vmatprep.subr.mxu0 0.0
    %2267 = vmatpush2.msra.mxu0 0.0
    %2268 = vmatprep.subr.mxu0 0.0
    %2269 = vmatpush2.msra.mxu0 0.0
    %2270 = vmatprep.subr.mxu0 0.0
    %2271 = vmatpush2.msra.mxu0 0.0
    %2272 = vmatprep.subr.mxu0 0.0
    %2273 = vmatpush2.msra.mxu0 0.0
    %2274 = vmatprep.subr.mxu0 0.0
    %2275 = vmatpush2.msra.mxu0 0.0
    %2276 = vmatprep.subr.mxu0 0.0
    %2277 = vmatpush2.msra.mxu0 0.0
    %2278 = vmatprep.subr.mxu0 0.0
    %2279 = vmatpush2.msra.mxu0 0.0
    %2280 = vmatprep.subr.mxu0 0.0
    %2281 = vmatpush2.msra.mxu0 0.0
    %2282 = vmatprep.subr.mxu0 0.0
    %2283 = vmatpush2.msra.mxu0 0.0
    %2284 = vmatprep.subr.mxu0 0.0
    %2285 = vmatpush2.msra.mxu0 0.0
    %2286 = vmatprep.subr.mxu0 0.0
    %2287 = vmatpush2.msra.mxu0 0.0
    %2288 = vmatprep.mubr.f32.mxu0 0.0
    %2289 = vmatmul.mubr.f32.gmra.mxu0 %v2200
    %v2290 = vpop.f32.mrf.mxu0
    %v2291 = vadd.f32 %v2222, %v2290
    %v2292 = vpop.f32.mrf.mxu0
    %2293 = vdwg.mxu0
    %vm2294 = vcmask 74752
    %2295 = vst.msk [vmem:[#allocation5] sm:$0x3] %vm2294, %v2291
    // Predicated region
    $region38: #{tpu_custom_call.1} parent=1 // pred_check
      _
    $region39: #{tpu_custom_call.1} parent=1 // pred_check_branch
      %2297 = sbr.rel (0) target = $region41
    $region40: #{tpu_custom_call.1} parent=1 // pred_region
      %s2299 = ssub.s32 32, 32
      %2300 = vsyncadd [#allocation6], %s2299
      %s2302 = sshll.u32 [#allocation5], 4
      %s2303 = int_to_ptr.vmem [resolvable:$true] %s2302
      %2305 = dma.vmem_to_hbm [thread:$0]  %s2303, 32, %s9, [#allocation6]
    $region41: #{tpu_custom_call.1} parent=1 // pred_fallthru
      _
    // Predicated region
    $region42: #{tpu_custom_call.1} parent=1 // pred_check
      _
    $region43: #{tpu_custom_call.1} parent=1 // pred_check_branch
      %2307 = sbr.rel (0) target = $region45
    $region44: #{tpu_custom_call.1} parent=1 // pred_region
      %2308 = dma.done [#allocation6], 32
    $region45: #{tpu_custom_call.1} parent=1 // pred_fallthru
      _
    %2309 = vsyncpa [#allocation6], 1

</llo_original>
